<compile_context>
chip_gen: v7x
topology: tpu7x:2x2x1
jax: 0.10.0
libtpu: 0.0.40
codegen_flags: <defaults>
</compile_context>

<pallas_src>
import jax
import jax.numpy as jnp
from jax import lax
from jax.experimental import pallas as pl
from jax.experimental.pallas import tpu as pltpu

EPS = 1e-5
NEG_SLOPE = 0.3


# ----------------------------- Pallas kernels ------------------------------ #
def _conv_bias_stats_kernel(p_ref, w_ref, b_ref, y_ref, s1_ref, s2_ref):
    # p_ref: (K, TM) bf16 patches tile, w_ref: (Cout, K) bf16 (resident),
    # b_ref: (Cout, 1) f32 (resident), y_ref: (Cout, TM) f32 conv slab tile,
    # s1/s2_ref: (1, Cout, 1) per-tile sum / sum-of-squares partials.
    acc = jnp.dot(w_ref[...], p_ref[...], preferred_element_type=jnp.float32)
    acc = acc + b_ref[...]                                  # (Cout, TM) + (Cout, 1)
    y_ref[...] = acc
    s1_ref[0] = jnp.sum(acc, axis=1, keepdims=True)         # (Cout, 1)
    s2_ref[0] = jnp.sum(acc * acc, axis=1, keepdims=True)   # (Cout, 1)


def _mm_bias_kernel(p_ref, w_ref, b_ref, y_ref):
    # Single fused matmul + bias (used for the 4-phase ConvTranspose2d).
    acc = jnp.dot(w_ref[...], p_ref[...], preferred_element_type=jnp.float32)
    y_ref[...] = (acc + b_ref[...]).astype(y_ref.dtype)


def _bn_lrelu_kernel(y_ref, mean_ref, var_ref, g_ref, beta_ref, o_ref):
    # y_ref: (Cout, TM) f32 conv slab tile; per-channel vectors (Cout, 1) are resident.
    inv = lax.rsqrt(var_ref[...] + EPS)                     # EUP slot
    scale = g_ref[...] * inv
    shift = beta_ref[...] - mean_ref[...] * scale
    y = y_ref[...] * scale + shift
    o_ref[...] = jnp.where(y >= 0.0, y, NEG_SLOPE * y).astype(o_ref.dtype)


# ------------------------------ pallas_call glue ---------------------------- #
def _pick_tm(m):
    for t in (1024, 512, 256):
        if m % t == 0 and m > t:
            return t
    return m


def _conv_pass1(patches, w_mat, bias_col, tm):
    k, m = patches.shape
    co = w_mat.shape[0]
    nt = m // tm
    return pl.pallas_call(
        _conv_bias_stats_kernel,
        out_shape=(jax.ShapeDtypeStruct((co, m), jnp.float32),
                   jax.ShapeDtypeStruct((nt, co, 1), jnp.float32),
                   jax.ShapeDtypeStruct((nt, co, 1), jnp.float32)),
        grid=(nt,),
        in_specs=[pl.BlockSpec((k, tm), lambda i: (0, i)),
                  pl.BlockSpec((co, k), lambda i: (0, 0)),    # resident weights
                  pl.BlockSpec((co, 1), lambda i: (0, 0))],   # resident bias
        out_specs=(pl.BlockSpec((co, tm), lambda i: (0, i)),
                   pl.BlockSpec((1, co, 1), lambda i: (i, 0, 0)),
                   pl.BlockSpec((1, co, 1), lambda i: (i, 0, 0))),
        compiler_params=pltpu.CompilerParams(dimension_semantics=("parallel",)),
    )(patches, w_mat, bias_col)


def _bn_lrelu_pass2(y, mean, var, gamma, beta, tm, out_dtype):
    co, m = y.shape
    nt = m // tm
    return pl.pallas_call(
        _bn_lrelu_kernel,
        out_shape=jax.ShapeDtypeStruct((co, m), out_dtype),
        grid=(nt,),
        in_specs=[pl.BlockSpec((co, tm), lambda i: (0, i))]
                 + [pl.BlockSpec((co, 1), lambda i: (0, 0))] * 4,   # resident vectors
        out_specs=pl.BlockSpec((co, tm), lambda i: (0, i)),
        compiler_params=pltpu.CompilerParams(dimension_semantics=("parallel",)),
    )(y, mean, var, gamma, beta)


def _matmul_bias(patches, w_mat, bias_col, tm):
    k, m = patches.shape
    co = w_mat.shape[0]
    nt = m // tm
    return pl.pallas_call(
        _mm_bias_kernel,
        out_shape=jax.ShapeDtypeStruct((co, m), jnp.float32),
        grid=(nt,),
        in_specs=[pl.BlockSpec((k, tm), lambda i: (0, i)),
                  pl.BlockSpec((co, k), lambda i: (0, 0)),
                  pl.BlockSpec((co, 1), lambda i: (0, 0))],
        out_specs=pl.BlockSpec((co, tm), lambda i: (0, i)),
        compiler_params=pltpu.CompilerParams(dimension_semantics=("parallel",)),
    )(patches, w_mat, bias_col)


# ------------------------------- layer wrappers ----------------------------- #
def conv_bn_lrelu(x_cnhw, w_oihw, b, gamma, beta):
    """Conv2d(Cin,Cout,3,padding=1) + BatchNorm2d (batch stats) + LeakyReLU(0.3).

    x_cnhw: (Cin, N, H, W) bf16 channel-major activations -> returns (Cout, N, H, W) bf16.
    """
    cin, n, h, w = x_cnhw.shape
    cout = w_oihw.shape[0]
    m = n * h * w
    xp = jnp.pad(x_cnhw, ((0, 0), (0, 0), (1, 1), (1, 1)))
    taps = [xp[:, :, dy:dy + h, dx:dx + w].reshape(cin, m)
            for dy in range(3) for dx in range(3)]
    patches = jnp.concatenate(taps, axis=0)                        # (9*Cin, M) bf16
    w_mat = jnp.transpose(w_oihw, (0, 2, 3, 1)).reshape(cout, 9 * cin)
    w_mat = w_mat.astype(jnp.bfloat16)                             # (Cout, 9*Cin)
    tm = _pick_tm(m)

    y, s1, s2 = _conv_pass1(patches, w_mat, b.reshape(cout, 1).astype(jnp.float32), tm)
    mean = jnp.sum(s1, axis=0) / m                                 # (Cout, 1) f32
    var = jnp.sum(s2, axis=0) / m - mean * mean                    # biased batch variance
    out = _bn_lrelu_pass2(y, mean, var,
                          gamma.reshape(cout, 1).astype(jnp.float32),
                          beta.reshape(cout, 1).astype(jnp.float32),
                          tm, jnp.bfloat16)
    return out.reshape(cout, n, h, w)


def conv_transpose_2x(x_cnhw, w_iohw, b):
    """ConvTranspose2d(Cin,Cout,3,stride=2,padding=1,output_padding=1) via 4-phase sub-pixel conv.

    out[oh, ow] with oh = 2*ih - 1 + kh, ow = 2*iw - 1 + kw:
      even output parity uses kh(kw)=1, odd parity uses kh(kw) in {0, 2} -> 4 phases, each a small
      matmul over the ORIGINAL HxW grid (taps: x[m,p], x[m,p+1], x[m+1,p], x[m+1,p+1], zero-padded
      one pixel on the bottom/right). Returns (N, Cout, 2H, 2W) f32.
    """
    cin, n, h, w = x_cnhw.shape
    cout = w_iohw.shape[1]
    m = n * h * w
    xq = jnp.pad(x_cnhw, ((0, 0), (0, 0), (0, 1), (0, 1)))         # zero-pad bottom/right
    taps = [xq[:, :, dr:dr + h, dc:dc + w].reshape(cin, m)
            for dr in range(2) for dc in range(2)]
    patches = jnp.concatenate(taps, axis=0)                        # (4*Cin, M) bf16

    # phase weights: W4[(2r+s)*Cout + o, (2dr+dc)*Cin + i] = w_t[i, o, kh(r,dr), kw(s,dc)] or 0
    khm = {(0, 0): 1, (1, 0): 2, (1, 1): 0}
    wt = w_iohw.astype(jnp.float32)
    rows = []
    for r in (0, 1):
        for s in (0, 1):
            blocks = []
            for dr in (0, 1):
                for dc in (0, 1):
                    kh = khm.get((r, dr))
                    kw = khm.get((s, dc))
                    if kh is None or kw is None:
                        blocks.append(jnp.zeros((cout, cin), jnp.float32))
                    else:
                        blocks.append(wt[:, :, kh, kw].T)          # (Cout, Cin)
            rows.append(jnp.concatenate(blocks, axis=1))           # (Cout, 4*Cin)
    w4 = jnp.concatenate(rows, axis=0).astype(jnp.bfloat16)        # (4*Cout, 4*Cin)
    b4 = jnp.concatenate([b] * 4).reshape(4 * cout, 1).astype(jnp.float32)

    tm = _pick_tm(m)
    ph = _matmul_bias(patches, w4, b4, tm)                         # (4*Cout, M) f32
    ph = ph.reshape(2, 2, cout, n, h, w)                           # (r, s, c, n, m, p)
    out = jnp.transpose(ph, (3, 2, 4, 0, 5, 1)).reshape(n, cout, 2 * h, 2 * w)
    return out


def up_forward(x_nchw, p):
    """Forward of `up(x, y)`: conv(x->2y) -> conv(2y->2y) -> ConvTranspose(2y->y). NCHW in/out."""
    x = jnp.transpose(x_nchw, (1, 0, 2, 3)).astype(jnp.bfloat16)   # channel-major (C, N, H, W)
    x = conv_bn_lrelu(x, p["w1"], p["b1"], p["g1"], p["bn_b1"])
    x = conv_bn_lrelu(x, p["w2"], p["b2"], p["g2"], p["bn_b2"])
    return conv_transpose_2x(x, p["wt"], p["bt"])                  # (N, Cout, 2H, 2W) f32


# ----------------------- plain-JAX reference (check) ----------------------- #
# The reference mirrors the kernel's precision policy (bf16 matmul operands, f32 accumulation and
# f32 BatchNorm / LeakyReLU math), so the comparison isolates structural correctness of the Pallas
# path (tiling, fused-K matmul, two-pass BN, 4-phase transposed conv) from bf16 rounding.
def _ref_conv_block(x, w, b, g, beta):
    y = lax.conv_general_dilated(x.astype(jnp.bfloat16), w.astype(jnp.bfloat16),
                                 (1, 1), ((1, 1), (1, 1)),
                                 dimension_numbers=("NCHW", "OIHW", "NCHW"),
                                 preferred_element_type=jnp.float32)
    y = y + b[None, :, None, None]
    mean = jnp.mean(y, axis=(0, 2, 3), keepdims=True)
    var = jnp.mean((y - mean) ** 2, axis=(0, 2, 3), keepdims=True)
    y = (y - mean) * lax.rsqrt(var + EPS) * g[None, :, None, None] \
        + beta[None, :, None, None]
    return jnp.where(y >= 0.0, y, NEG_SLOPE * y)


def _ref_up(x, p):
    y = _ref_conv_block(x, p["w1"], p["b1"], p["g1"], p["bn_b1"])
    y = _ref_conv_block(y, p["w2"], p["b2"], p["g2"], p["bn_b2"])
    w_eq = jnp.transpose(p["wt"][:, :, ::-1, ::-1], (1, 0, 2, 3)).astype(jnp.bfloat16)
    y = lax.conv_general_dilated(y.astype(jnp.bfloat16), w_eq, (1, 1), ((1, 2), (1, 2)),
                                 lhs_dilation=(2, 2),
                                 dimension_numbers=("NCHW", "OIHW", "NCHW"),
                                 preferred_element_type=jnp.float32)
    return y + p["bt"][None, :, None, None]


if __name__ == "__main__":
    key = jax.random.PRNGKey(0)
    ks = jax.random.split(key, 10)
    cin, cy = 4, 4            # up(x=4, y=4): internal width 2*y = 8, output channels y = 4
    c2 = 2 * cy
    x = jax.random.normal(ks[0], (2, cin, 16, 16), jnp.float32)
    params = {
        "w1": 0.2 * jax.random.normal(ks[1], (c2, cin, 3, 3), jnp.float32),
        "b1": 0.1 * jax.random.normal(ks[2], (c2,), jnp.float32),
        "g1": 1.0 + 0.1 * jax.random.normal(ks[3], (c2,), jnp.float32),
        "bn_b1": 0.1 * jax.random.normal(ks[4], (c2,), jnp.float32),
        "w2": 0.2 * jax.random.normal(ks[5], (c2, c2, 3, 3), jnp.float32),
        "b2": 0.1 * jax.random.normal(ks[6], (c2,), jnp.float32),
        "g2": 1.0 + 0.1 * jax.random.normal(ks[7], (c2,), jnp.float32),
        "bn_b2": 0.1 * jax.random.normal(ks[8], (c2,), jnp.float32),
        "wt": 0.2 * jax.random.normal(ks[9], (c2, cy, 3, 3), jnp.float32),
        "bt": jnp.linspace(-0.1, 0.1, cy, dtype=jnp.float32),
    }

    out = jax.jit(up_forward)(x, params)
    out = jax.block_until_ready(out)
    assert out.shape == (2, cy, 32, 32), out.shape

    ref = _ref_up(x, params)
    err = float(jnp.max(jnp.abs(out - ref)))
    assert jnp.allclose(out, ref, rtol=2e-3, atol=2e-3), err
    print("KERNEL_OK")
</pallas_src>

<mosaic_0001>
module attributes {stable_mosaic.version = 11 : i64} {
  func.func @_conv_bias_stats_kernel(%arg0: i32, %arg1: memref<36x256xbf16, #tpu.memory_space<vmem>>, %arg2: memref<8x36xbf16, #tpu.memory_space<vmem>>, %arg3: memref<8x1xf32, #tpu.memory_space<vmem>>, %arg4: memref<8x256xf32, #tpu.memory_space<vmem>>, %arg5: memref<1x8x1xf32, #tpu.memory_space<vmem>>, %arg6: memref<1x8x1xf32, #tpu.memory_space<vmem>>) attributes {dimension_semantics = [#tpu.dimension_semantics<parallel>], iteration_bounds = array<i64: 2>, scalar_prefetch = 0 : i64, scratch_operands = 0 : i64, tpu.core_type = #tpu.core_type<tc>, window_params = [{transform_indices = @transform_0, window_bounds = array<i64: 36, 256>}, {pipeline_mode = #tpu.pipeline_mode<synchronous>, transform_indices = @transform_1, window_bounds = array<i64: 8, 36>}, {pipeline_mode = #tpu.pipeline_mode<synchronous>, transform_indices = @transform_2, window_bounds = array<i64: 8, 1>}, {transform_indices = @transform_3, window_bounds = array<i64: 8, 256>}, {transform_indices = @transform_4, window_bounds = array<i64: 1, 8, 1>}, {transform_indices = @transform_5, window_bounds = array<i64: 1, 8, 1>}]} {
    %c0 = arith.constant 0 : index
    %c0_0 = arith.constant 0 : index
    %0 = vector.load %arg2[%c0, %c0_0] : memref<8x36xbf16, #tpu.memory_space<vmem>>, vector<8x36xbf16>
    %c0_1 = arith.constant 0 : index
    %c0_2 = arith.constant 0 : index
    %1 = vector.load %arg1[%c0_1, %c0_2] : memref<36x256xbf16, #tpu.memory_space<vmem>>, vector<36x256xbf16>
    %cst = arith.constant dense<0.000000e+00> : vector<8x256xf32>
    %2 = tpu.matmul %0, %1, %cst {dimension_numbers = #tpu.dot_dimension_numbers<[1], [0], [0], [1], [0, 0, 1, 1], [], []>} : vector<8x36xbf16>, vector<36x256xbf16>, vector<8x256xf32> -> vector<8x256xf32>
    %c0_3 = arith.constant 0 : index
    %c0_4 = arith.constant 0 : index
    %3 = vector.load %arg3[%c0_3, %c0_4] : memref<8x1xf32, #tpu.memory_space<vmem>>, vector<8x1xf32>
    %4 = vector.broadcast %3 : vector<8x1xf32> to vector<8x256xf32>
    %5 = arith.addf %2, %4 : vector<8x256xf32>
    %c0_5 = arith.constant 0 : index
    %c0_6 = arith.constant 0 : index
    %6 = vector.load %arg4[%c0_5, %c0_6] : memref<8x256xf32, #tpu.memory_space<vmem>>, vector<8x256xf32>
    tpu.vector_store %arg4[%c0_5, %c0_6], %5 {strides = array<i32>} : memref<8x256xf32, #tpu.memory_space<vmem>>, vector<8x256xf32>,
    %cst_7 = arith.constant dense<0.000000e+00> : vector<8xf32>
    %7 = vector.multi_reduction <add>, %5, %cst_7 [1] : vector<8x256xf32> to vector<8xf32>
    %8 = vector.shape_cast %7 : vector<8xf32> to vector<8x1xf32>
    %c0_8 = arith.constant 0 : index
    %c0_9 = arith.constant 0 : index
    %c0_10 = arith.constant 0 : index
    %9 = vector.load %arg5[%c0_8, %c0_9, %c0_10] : memref<1x8x1xf32, #tpu.memory_space<vmem>>, vector<1x8x1xf32>
    %10 = vector.shape_cast %9 : vector<1x8x1xf32> to vector<8x1xf32>
    %11 = vector.shape_cast %8 : vector<8x1xf32> to vector<1x8x1xf32>
    tpu.vector_store %arg5[%c0_8, %c0_9, %c0_10], %11 {strides = array<i32>} : memref<1x8x1xf32, #tpu.memory_space<vmem>>, vector<1x8x1xf32>,
    %12 = arith.mulf %5, %5 : vector<8x256xf32>
    %cst_11 = arith.constant dense<0.000000e+00> : vector<8xf32>
    %13 = vector.multi_reduction <add>, %12, %cst_11 [1] : vector<8x256xf32> to vector<8xf32>
    %14 = vector.shape_cast %13 : vector<8xf32> to vector<8x1xf32>
    %c0_12 = arith.constant 0 : index
    %c0_13 = arith.constant 0 : index
    %c0_14 = arith.constant 0 : index
    %15 = vector.load %arg6[%c0_12, %c0_13, %c0_14] : memref<1x8x1xf32, #tpu.memory_space<vmem>>, vector<1x8x1xf32>
    %16 = vector.shape_cast %15 : vector<1x8x1xf32> to vector<8x1xf32>
    %17 = vector.shape_cast %14 : vector<8x1xf32> to vector<1x8x1xf32>
    tpu.vector_store %arg6[%c0_12, %c0_13, %c0_14], %17 {strides = array<i32>} : memref<1x8x1xf32, #tpu.memory_space<vmem>>, vector<1x8x1xf32>,
    return
  }
  func.func @transform_0(%arg0: i32) -> (i32, i32) {
    %c0_i32 = arith.constant 0 : i32
    %c0_i32_0 = arith.constant 0 : i32
    return %c0_i32, %arg0 : i32, i32
  }
  func.func @transform_1(%arg0: i32) -> (i32, i32) {
    %c0_i32 = arith.constant 0 : i32
    %c0_i32_0 = arith.constant 0 : i32
    %c0_i32_1 = arith.constant 0 : i32
    return %c0_i32, %c0_i32_0 : i32, i32
  }
  func.func @transform_2(%arg0: i32) -> (i32, i32) {
    %c0_i32 = arith.constant 0 : i32
    %c0_i32_0 = arith.constant 0 : i32
    %c0_i32_1 = arith.constant 0 : i32
    return %c0_i32, %c0_i32_0 : i32, i32
  }
  func.func @transform_3(%arg0: i32) -> (i32, i32) {
    %c0_i32 = arith.constant 0 : i32
    %c0_i32_0 = arith.constant 0 : i32
    return %c0_i32, %arg0 : i32, i32
  }
  func.func @transform_4(%arg0: i32) -> (i32, i32, i32) {
    %c0_i32 = arith.constant 0 : i32
    %c0_i32_0 = arith.constant 0 : i32
    %c0_i32_1 = arith.constant 0 : i32
    return %arg0, %c0_i32, %c0_i32_0 : i32, i32, i32
  }
  func.func @transform_5(%arg0: i32) -> (i32, i32, i32) {
    %c0_i32 = arith.constant 0 : i32
    %c0_i32_0 = arith.constant 0 : i32
    %c0_i32_1 = arith.constant 0 : i32
    return %arg0, %c0_i32, %c0_i32_0 : i32, i32, i32
  }
}

module attributes {stable_mosaic.version = 11 : i64} {
  func.func @_bn_lrelu_kernel(%arg0: i32, %arg1: memref<8x256xf32, #tpu.memory_space<vmem>>, %arg2: memref<8x1xf32, #tpu.memory_space<vmem>>, %arg3: memref<8x1xf32, #tpu.memory_space<vmem>>, %arg4: memref<8x1xf32, #tpu.memory_space<vmem>>, %arg5: memref<8x1xf32, #tpu.memory_space<vmem>>, %arg6: memref<8x256xbf16, #tpu.memory_space<vmem>>) attributes {dimension_semantics = [#tpu.dimension_semantics<parallel>], iteration_bounds = array<i64: 2>, scalar_prefetch = 0 : i64, scratch_operands = 0 : i64, tpu.core_type = #tpu.core_type<tc>, window_params = [{transform_indices = @transform_0, window_bounds = array<i64: 8, 256>}, {pipeline_mode = #tpu.pipeline_mode<synchronous>, transform_indices = @transform_1, window_bounds = array<i64: 8, 1>}, {pipeline_mode = #tpu.pipeline_mode<synchronous>, transform_indices = @transform_2, window_bounds = array<i64: 8, 1>}, {pipeline_mode = #tpu.pipeline_mode<synchronous>, transform_indices = @transform_3, window_bounds = array<i64: 8, 1>}, {pipeline_mode = #tpu.pipeline_mode<synchronous>, transform_indices = @transform_4, window_bounds = array<i64: 8, 1>}, {transform_indices = @transform_5, window_bounds = array<i64: 8, 256>}]} {
    %c0 = arith.constant 0 : index
    %c0_0 = arith.constant 0 : index
    %0 = vector.load %arg3[%c0, %c0_0] : memref<8x1xf32, #tpu.memory_space<vmem>>, vector<8x1xf32>
    %cst = arith.constant 9.99999974E-6 : f32
    %1 = vector.broadcast %cst : f32 to vector<8x1xf32>
    %2 = arith.addf %0, %1 : vector<8x1xf32>
    %3 = math.rsqrt %2 : vector<8x1xf32>
    %c0_1 = arith.constant 0 : index
    %c0_2 = arith.constant 0 : index
    %4 = vector.load %arg4[%c0_1, %c0_2] : memref<8x1xf32, #tpu.memory_space<vmem>>, vector<8x1xf32>
    %5 = arith.mulf %4, %3 : vector<8x1xf32>
    %c0_3 = arith.constant 0 : index
    %c0_4 = arith.constant 0 : index
    %6 = vector.load %arg5[%c0_3, %c0_4] : memref<8x1xf32, #tpu.memory_space<vmem>>, vector<8x1xf32>
    %c0_5 = arith.constant 0 : index
    %c0_6 = arith.constant 0 : index
    %7 = vector.load %arg2[%c0_5, %c0_6] : memref<8x1xf32, #tpu.memory_space<vmem>>, vector<8x1xf32>
    %8 = arith.mulf %7, %5 : vector<8x1xf32>
    %9 = arith.subf %6, %8 : vector<8x1xf32>
    %c0_7 = arith.constant 0 : index
    %c0_8 = arith.constant 0 : index
    %10 = vector.load %arg1[%c0_7, %c0_8] : memref<8x256xf32, #tpu.memory_space<vmem>>, vector<8x256xf32>
    %11 = vector.broadcast %5 : vector<8x1xf32> to vector<8x256xf32>
    %12 = arith.mulf %10, %11 : vector<8x256xf32>
    %13 = vector.broadcast %9 : vector<8x1xf32> to vector<8x256xf32>
    %14 = arith.addf %12, %13 : vector<8x256xf32>
    %cst_9 = arith.constant 0.000000e+00 : f32
    %15 = vector.broadcast %cst_9 : f32 to vector<8x256xf32>
    %16 = arith.cmpf oge, %14, %15 : vector<8x256xf32>
    %cst_10 = arith.constant 3.000000e-01 : f32
    %17 = vector.broadcast %cst_10 : f32 to vector<8x256xf32>
    %18 = arith.mulf %17, %14 : vector<8x256xf32>
    %19 = arith.select %16, %14, %18 : vector<8x256xi1>, vector<8x256xf32>
    %20 = arith.truncf %19 : vector<8x256xf32> to vector<8x256xbf16>
    %c0_11 = arith.constant 0 : index
    %c0_12 = arith.constant 0 : index
    %21 = vector.load %arg6[%c0_11, %c0_12] : memref<8x256xbf16, #tpu.memory_space<vmem>>, vector<8x256xbf16>
    tpu.vector_store %arg6[%c0_11, %c0_12], %20 {strides = array<i32>} : memref<8x256xbf16, #tpu.memory_space<vmem>>, vector<8x256xbf16>,
    return
  }
  func.func @transform_0(%arg0: i32) -> (i32, i32) {
    %c0_i32 = arith.constant 0 : i32
    %c0_i32_0 = arith.constant 0 : i32
    return %c0_i32, %arg0 : i32, i32
  }
  func.func @transform_1(%arg0: i32) -> (i32, i32) {
    %c0_i32 = arith.constant 0 : i32
    %c0_i32_0 = arith.constant 0 : i32
    %c0_i32_1 = arith.constant 0 : i32
    return %c0_i32, %c0_i32_0 : i32, i32
  }
  func.func @transform_2(%arg0: i32) -> (i32, i32) {
    %c0_i32 = arith.constant 0 : i32
    %c0_i32_0 = arith.constant 0 : i32
    %c0_i32_1 = arith.constant 0 : i32
    return %c0_i32, %c0_i32_0 : i32, i32
  }
  func.func @transform_3(%arg0: i32) -> (i32, i32) {
    %c0_i32 = arith.constant 0 : i32
    %c0_i32_0 = arith.constant 0 : i32
    %c0_i32_1 = arith.constant 0 : i32
    return %c0_i32, %c0_i32_0 : i32, i32
  }
  func.func @transform_4(%arg0: i32) -> (i32, i32) {
    %c0_i32 = arith.constant 0 : i32
    %c0_i32_0 = arith.constant 0 : i32
    %c0_i32_1 = arith.constant 0 : i32
    return %c0_i32, %c0_i32_0 : i32, i32
  }
  func.func @transform_5(%arg0: i32) -> (i32, i32) {
    %c0_i32 = arith.constant 0 : i32
    %c0_i32_0 = arith.constant 0 : i32
    return %c0_i32, %arg0 : i32, i32
  }
}

module attributes {stable_mosaic.version = 11 : i64} {
  func.func @_conv_bias_stats_kernel(%arg0: i32, %arg1: memref<72x256xbf16, #tpu.memory_space<vmem>>, %arg2: memref<8x72xbf16, #tpu.memory_space<vmem>>, %arg3: memref<8x1xf32, #tpu.memory_space<vmem>>, %arg4: memref<8x256xf32, #tpu.memory_space<vmem>>, %arg5: memref<1x8x1xf32, #tpu.memory_space<vmem>>, %arg6: memref<1x8x1xf32, #tpu.memory_space<vmem>>) attributes {dimension_semantics = [#tpu.dimension_semantics<parallel>], iteration_bounds = array<i64: 2>, scalar_prefetch = 0 : i64, scratch_operands = 0 : i64, tpu.core_type = #tpu.core_type<tc>, window_params = [{transform_indices = @transform_0, window_bounds = array<i64: 72, 256>}, {pipeline_mode = #tpu.pipeline_mode<synchronous>, transform_indices = @transform_1, window_bounds = array<i64: 8, 72>}, {pipeline_mode = #tpu.pipeline_mode<synchronous>, transform_indices = @transform_2, window_bounds = array<i64: 8, 1>}, {transform_indices = @transform_3, window_bounds = array<i64: 8, 256>}, {transform_indices = @transform_4, window_bounds = array<i64: 1, 8, 1>}, {transform_indices = @transform_5, window_bounds = array<i64: 1, 8, 1>}]} {
    %c0 = arith.constant 0 : index
    %c0_0 = arith.constant 0 : index
    %0 = vector.load %arg2[%c0, %c0_0] : memref<8x72xbf16, #tpu.memory_space<vmem>>, vector<8x72xbf16>
    %c0_1 = arith.constant 0 : index
    %c0_2 = arith.constant 0 : index
    %1 = vector.load %arg1[%c0_1, %c0_2] : memref<72x256xbf16, #tpu.memory_space<vmem>>, vector<72x256xbf16>
    %cst = arith.constant dense<0.000000e+00> : vector<8x256xf32>
    %2 = tpu.matmul %0, %1, %cst {dimension_numbers = #tpu.dot_dimension_numbers<[1], [0], [0], [1], [0, 0, 1, 1], [], []>} : vector<8x72xbf16>, vector<72x256xbf16>, vector<8x256xf32> -> vector<8x256xf32>
    %c0_3 = arith.constant 0 : index
    %c0_4 = arith.constant 0 : index
    %3 = vector.load %arg3[%c0_3, %c0_4] : memref<8x1xf32, #tpu.memory_space<vmem>>, vector<8x1xf32>
    %4 = vector.broadcast %3 : vector<8x1xf32> to vector<8x256xf32>
    %5 = arith.addf %2, %4 : vector<8x256xf32>
    %c0_5 = arith.constant 0 : index
    %c0_6 = arith.constant 0 : index
    %6 = vector.load %arg4[%c0_5, %c0_6] : memref<8x256xf32, #tpu.memory_space<vmem>>, vector<8x256xf32>
    tpu.vector_store %arg4[%c0_5, %c0_6], %5 {strides = array<i32>} : memref<8x256xf32, #tpu.memory_space<vmem>>, vector<8x256xf32>,
    %cst_7 = arith.constant dense<0.000000e+00> : vector<8xf32>
    %7 = vector.multi_reduction <add>, %5, %cst_7 [1] : vector<8x256xf32> to vector<8xf32>
    %8 = vector.shape_cast %7 : vector<8xf32> to vector<8x1xf32>
    %c0_8 = arith.constant 0 : index
    %c0_9 = arith.constant 0 : index
    %c0_10 = arith.constant 0 : index
    %9 = vector.load %arg5[%c0_8, %c0_9, %c0_10] : memref<1x8x1xf32, #tpu.memory_space<vmem>>, vector<1x8x1xf32>
    %10 = vector.shape_cast %9 : vector<1x8x1xf32> to vector<8x1xf32>
    %11 = vector.shape_cast %8 : vector<8x1xf32> to vector<1x8x1xf32>
    tpu.vector_store %arg5[%c0_8, %c0_9, %c0_10], %11 {strides = array<i32>} : memref<1x8x1xf32, #tpu.memory_space<vmem>>, vector<1x8x1xf32>,
    %12 = arith.mulf %5, %5 : vector<8x256xf32>
    %cst_11 = arith.constant dense<0.000000e+00> : vector<8xf32>
    %13 = vector.multi_reduction <add>, %12, %cst_11 [1] : vector<8x256xf32> to vector<8xf32>
    %14 = vector.shape_cast %13 : vector<8xf32> to vector<8x1xf32>
    %c0_12 = arith.constant 0 : index
    %c0_13 = arith.constant 0 : index
    %c0_14 = arith.constant 0 : index
    %15 = vector.load %arg6[%c0_12, %c0_13, %c0_14] : memref<1x8x1xf32, #tpu.memory_space<vmem>>, vector<1x8x1xf32>
    %16 = vector.shape_cast %15 : vector<1x8x1xf32> to vector<8x1xf32>
    %17 = vector.shape_cast %14 : vector<8x1xf32> to vector<1x8x1xf32>
    tpu.vector_store %arg6[%c0_12, %c0_13, %c0_14], %17 {strides = array<i32>} : memref<1x8x1xf32, #tpu.memory_space<vmem>>, vector<1x8x1xf32>,
    return
  }
  func.func @transform_0(%arg0: i32) -> (i32, i32) {
    %c0_i32 = arith.constant 0 : i32
    %c0_i32_0 = arith.constant 0 : i32
    return %c0_i32, %arg0 : i32, i32
  }
  func.func @transform_1(%arg0: i32) -> (i32, i32) {
    %c0_i32 = arith.constant 0 : i32
    %c0_i32_0 = arith.constant 0 : i32
    %c0_i32_1 = arith.constant 0 : i32
    return %c0_i32, %c0_i32_0 : i32, i32
  }
  func.func @transform_2(%arg0: i32) -> (i32, i32) {
    %c0_i32 = arith.constant 0 : i32
    %c0_i32_0 = arith.constant 0 : i32
    %c0_i32_1 = arith.constant 0 : i32
    return %c0_i32, %c0_i32_0 : i32, i32
  }
  func.func @transform_3(%arg0: i32) -> (i32, i32) {
    %c0_i32 = arith.constant 0 : i32
    %c0_i32_0 = arith.constant 0 : i32
    return %c0_i32, %arg0 : i32, i32
  }
  func.func @transform_4(%arg0: i32) -> (i32, i32, i32) {
    %c0_i32 = arith.constant 0 : i32
    %c0_i32_0 = arith.constant 0 : i32
    %c0_i32_1 = arith.constant 0 : i32
    return %arg0, %c0_i32, %c0_i32_0 : i32, i32, i32
  }
  func.func @transform_5(%arg0: i32) -> (i32, i32, i32) {
    %c0_i32 = arith.constant 0 : i32
    %c0_i32_0 = arith.constant 0 : i32
    %c0_i32_1 = arith.constant 0 : i32
    return %arg0, %c0_i32, %c0_i32_0 : i32, i32, i32
  }
}

module attributes {stable_mosaic.version = 11 : i64} {
  func.func @_mm_bias_kernel(%arg0: i32, %arg1: memref<32x256xbf16, #tpu.memory_space<vmem>>, %arg2: memref<16x32xbf16, #tpu.memory_space<vmem>>, %arg3: memref<16x1xf32, #tpu.memory_space<vmem>>, %arg4: memref<16x256xf32, #tpu.memory_space<vmem>>) attributes {dimension_semantics = [#tpu.dimension_semantics<parallel>], iteration_bounds = array<i64: 2>, scalar_prefetch = 0 : i64, scratch_operands = 0 : i64, tpu.core_type = #tpu.core_type<tc>, window_params = [{transform_indices = @transform_0, window_bounds = array<i64: 32, 256>}, {pipeline_mode = #tpu.pipeline_mode<synchronous>, transform_indices = @transform_1, window_bounds = array<i64: 16, 32>}, {pipeline_mode = #tpu.pipeline_mode<synchronous>, transform_indices = @transform_2, window_bounds = array<i64: 16, 1>}, {transform_indices = @transform_3, window_bounds = array<i64: 16, 256>}]} {
    %c0 = arith.constant 0 : index
    %c0_0 = arith.constant 0 : index
    %0 = vector.load %arg2[%c0, %c0_0] : memref<16x32xbf16, #tpu.memory_space<vmem>>, vector<16x32xbf16>
    %c0_1 = arith.constant 0 : index
    %c0_2 = arith.constant 0 : index
    %1 = vector.load %arg1[%c0_1, %c0_2] : memref<32x256xbf16, #tpu.memory_space<vmem>>, vector<32x256xbf16>
    %cst = arith.constant dense<0.000000e+00> : vector<16x256xf32>
    %2 = tpu.matmul %0, %1, %cst {dimension_numbers = #tpu.dot_dimension_numbers<[1], [0], [0], [1], [0, 0, 1, 1], [], []>} : vector<16x32xbf16>, vector<32x256xbf16>, vector<16x256xf32> -> vector<16x256xf32>
    %c0_3 = arith.constant 0 : index
    %c0_4 = arith.constant 0 : index
    %3 = vector.load %arg3[%c0_3, %c0_4] : memref<16x1xf32, #tpu.memory_space<vmem>>, vector<16x1xf32>
    %4 = vector.broadcast %3 : vector<16x1xf32> to vector<16x256xf32>
    %5 = arith.addf %2, %4 : vector<16x256xf32>
    %c0_5 = arith.constant 0 : index
    %c0_6 = arith.constant 0 : index
    %6 = vector.load %arg4[%c0_5, %c0_6] : memref<16x256xf32, #tpu.memory_space<vmem>>, vector<16x256xf32>
    tpu.vector_store %arg4[%c0_5, %c0_6], %5 {strides = array<i32>} : memref<16x256xf32, #tpu.memory_space<vmem>>, vector<16x256xf32>,
    return
  }
  func.func @transform_0(%arg0: i32) -> (i32, i32) {
    %c0_i32 = arith.constant 0 : i32
    %c0_i32_0 = arith.constant 0 : i32
    return %c0_i32, %arg0 : i32, i32
  }
  func.func @transform_1(%arg0: i32) -> (i32, i32) {
    %c0_i32 = arith.constant 0 : i32
    %c0_i32_0 = arith.constant 0 : i32
    %c0_i32_1 = arith.constant 0 : i32
    return %c0_i32, %c0_i32_0 : i32, i32
  }
  func.func @transform_2(%arg0: i32) -> (i32, i32) {
    %c0_i32 = arith.constant 0 : i32
    %c0_i32_0 = arith.constant 0 : i32
    %c0_i32_1 = arith.constant 0 : i32
    return %c0_i32, %c0_i32_0 : i32, i32
  }
  func.func @transform_3(%arg0: i32) -> (i32, i32) {
    %c0_i32 = arith.constant 0 : i32
    %c0_i32_0 = arith.constant 0 : i32
    return %c0_i32, %arg0 : i32, i32
  }
}

</mosaic_0001>

<llo_original>
// kernel: up_forward.5
$region0: #{up_forward.5}
  #allocation0 [shape = 'u32[]', space=smem, size = 0x4, offset = 0x4, fixed_abs, tag = 'smem constant byte address 0x4 - core index']
  #allocation1 [shape = 'u32[144,128]{1,0:T(1,128)}', space=vmem, size = 0x12000, scoped, tag = 'internal scratch']
  %s0 = inlined_call_operand.vmem [shape: bf16[36,512], index: 0, kind: input, shape index: {}]
  %s1 = inlined_call_operand.vmem [shape: bf16[8,36], index: 1, kind: input, shape index: {}]
  %s2 = inlined_call_operand.vmem [shape: f32[8,1], index: 2, kind: input, shape index: {}]
  %s3 = inlined_call_operand.vmem [shape: f32[8,512], index: 3, kind: output, shape index: {0}]
  %s4 = inlined_call_operand.vmem [shape: f32[2,8,1], index: 4, kind: output, shape index: {1}]
  %s5 = inlined_call_operand.vmem [shape: f32[2,8,1], index: 5, kind: output, shape index: {2}]
  %6 = xla_tuple %s3, %s4, %s5
  %s7 = sld [smem:[#allocation0]]
  $region99: #{up_forward.5} parent=0
    _
  %s9 = ssub.s32 1, %s7
  %s10 = scalar_select 0, %s9, %s7
  $region1: #{up_forward.5} parent=0
    #allocation2 [shape = 'u8[40960]{0}', space=vmem, size = 0xa000, scoped, tag = 'input window, operand 0']
    loop: start=0, step=1, limit=4
    $region2: #{up_forward.5} parent=1 // loop_pre_header
      _
    $region3: #{up_forward.5} parent=1 // loop_header
      %s12 = sphi 0, %s16
      %p13 = scmp.ge.s32.totalorder %s12, 4
      %s22 = sphi 0, %s24
      %s25 = sphi 0, %s22
      %s26 = sphi 0, %s25
      %s42 = sphi 0, %s26
      %s46 = sphi 0, %s46
      %s48 = sphi 0, %s46
      %s49 = sphi 0, %s48
      %s63 = sphi 0, %s49
      %s67 = sphi 0, %s67
      %s69 = sphi 0, %s67
      %s70 = sphi 0, %s69
      %s84 = sphi 0, %s70
      %s90 = sphi 0, %s92
      %s93 = sphi 0, %s90
      %s94 = sphi 0, %s93
      %s110 = sphi 0, %s94
      %s116 = sphi 0, %s118
      %s119 = sphi 0, %s116
      %s120 = sphi 0, %s119
      %s136 = sphi 0, %s120
      %s142 = sphi 0, %s144
      %s145 = sphi 0, %s142
      %s146 = sphi 0, %s145
      %s162 = sphi 0, %s146
    $region4: #{up_forward.5} parent=1 // loop_header_branch
      %15 = sbr.rel (%p13) target = $region8
    $region5: #{up_forward.5} parent=1 // loop_body
      %s17 = ssub.s32 %s12, 1
      %s18 = ssub.s32 %s12, 2
      %s19 = sadd.s32 %s12, 1
      %s20 = ssub.s32 %s12, %s19
      %p21 = scmp.eq.s32.totalorder %s20, 0
      %s23 = sadd.s32 %s22, 1
      %s24 = scalar_select %p21, %s22, %s23
      %p27 = pneg %p21
      %p28 = scmp.eq.s32.totalorder %s12, 1
      %p29 = por %p27, %p28
      %p30 = scmp.ne.s32.totalorder %s22, %s25
      %p31 = scmp.eq.s32.totalorder %s12, 0
      %p32 = por %p30, %p31
      %p33 = scmp.ne.s32.totalorder %s22, %s25
      %p34 = scmp.eq.s32.totalorder %s17, 1
      %p35 = por %p33, %p34
      %p36 = scmp.ne.s32.totalorder %s25, %s26
      %p37 = scmp.eq.s32.totalorder %s17, 0
      %p38 = por %p36, %p37
      %p39 = scmp.ne.s32.totalorder %s25, %s26
      %p40 = scmp.eq.s32.totalorder %s18, 1
      %p41 = por %p39, %p40
      %p43 = scmp.ne.s32.totalorder %s26, %s42
      %p44 = scmp.eq.s32.totalorder %s18, 0
      %p45 = por %p43, %p44
      %s47 = sadd.s32 %s46, 1
      %p50 = scmp.eq.s32.totalorder %s12, 1
      %p51 = scmp.ne.s32.totalorder %s46, %s48
      %p52 = scmp.eq.s32.totalorder %s12, 0
      %p53 = por %p51, %p52
      %p54 = scmp.ne.s32.totalorder %s46, %s48
      %p55 = scmp.eq.s32.totalorder %s17, 1
      %p56 = por %p54, %p55
      %p57 = scmp.ne.s32.totalorder %s48, %s49
      %p58 = scmp.eq.s32.totalorder %s17, 0
      %p59 = por %p57, %p58
      %p60 = scmp.ne.s32.totalorder %s48, %s49
      %p61 = scmp.eq.s32.totalorder %s18, 1
      %p62 = por %p60, %p61
      %p64 = scmp.ne.s32.totalorder %s49, %s63
      %p65 = scmp.eq.s32.totalorder %s18, 0
      %p66 = por %p64, %p65
      %s68 = sadd.s32 %s67, 1
      %p71 = scmp.eq.s32.totalorder %s12, 1
      %p72 = scmp.ne.s32.totalorder %s67, %s69
      %p73 = scmp.eq.s32.totalorder %s12, 0
      %p74 = por %p72, %p73
      %p75 = scmp.ne.s32.totalorder %s67, %s69
      %p76 = scmp.eq.s32.totalorder %s17, 1
      %p77 = por %p75, %p76
      %p78 = scmp.ne.s32.totalorder %s69, %s70
      %p79 = scmp.eq.s32.totalorder %s17, 0
      %p80 = por %p78, %p79
      %p81 = scmp.ne.s32.totalorder %s69, %s70
      %p82 = scmp.eq.s32.totalorder %s18, 1
      %p83 = por %p81, %p82
      %p85 = scmp.ne.s32.totalorder %s70, %s84
      %p86 = scmp.eq.s32.totalorder %s18, 0
      %p87 = por %p85, %p86
      %s88 = ssub.s32 %s12, %s19
      %p89 = scmp.eq.s32.totalorder %s88, 0
      %s91 = sadd.s32 %s90, 1
      %s92 = scalar_select %p89, %s90, %s91
      %p95 = pneg %p89
      %p96 = scmp.eq.s32.totalorder %s12, 1
      %p97 = por %p95, %p96
      %p98 = scmp.ne.s32.totalorder %s90, %s93
      %p99 = scmp.eq.s32.totalorder %s12, 0
      %p100 = por %p98, %p99
      %p101 = scmp.ne.s32.totalorder %s90, %s93
      %p102 = scmp.eq.s32.totalorder %s17, 1
      %p103 = por %p101, %p102
      %p104 = scmp.ne.s32.totalorder %s93, %s94
      %p105 = scmp.eq.s32.totalorder %s17, 0
      %p106 = por %p104, %p105
      %p107 = scmp.ne.s32.totalorder %s93, %s94
      %p108 = scmp.eq.s32.totalorder %s18, 1
      %p109 = por %p107, %p108
      %p111 = scmp.ne.s32.totalorder %s94, %s110
      %p112 = scmp.eq.s32.totalorder %s18, 0
      %p113 = por %p111, %p112
      %s114 = ssub.s32 %s12, %s19
      %p115 = scmp.eq.s32.totalorder %s114, 0
      %s117 = sadd.s32 %s116, 1
      %s118 = scalar_select %p115, %s116, %s117
      %p121 = pneg %p115
      %p122 = scmp.eq.s32.totalorder %s12, 1
      %p123 = por %p121, %p122
      %p124 = scmp.ne.s32.totalorder %s116, %s119
      %p125 = scmp.eq.s32.totalorder %s12, 0
      %p126 = por %p124, %p125
      %p127 = scmp.ne.s32.totalorder %s116, %s119
      %p128 = scmp.eq.s32.totalorder %s17, 1
      %p129 = por %p127, %p128
      %p130 = scmp.ne.s32.totalorder %s119, %s120
      %p131 = scmp.eq.s32.totalorder %s17, 0
      %p132 = por %p130, %p131
      %p133 = scmp.ne.s32.totalorder %s119, %s120
      %p134 = scmp.eq.s32.totalorder %s18, 1
      %p135 = por %p133, %p134
      %p137 = scmp.ne.s32.totalorder %s120, %s136
      %p138 = scmp.eq.s32.totalorder %s18, 0
      %p139 = por %p137, %p138
      %s140 = ssub.s32 %s12, %s19
      %p141 = scmp.eq.s32.totalorder %s140, 0
      %s143 = sadd.s32 %s142, 1
      %s144 = scalar_select %p141, %s142, %s143
      %p147 = pneg %p141
      %p148 = scmp.eq.s32.totalorder %s12, 1
      %p149 = por %p147, %p148
      %p150 = scmp.ne.s32.totalorder %s142, %s145
      %p151 = scmp.eq.s32.totalorder %s12, 0
      %p152 = por %p150, %p151
      %p153 = scmp.ne.s32.totalorder %s142, %s145
      %p154 = scmp.eq.s32.totalorder %s17, 1
      %p155 = por %p153, %p154
      %p156 = scmp.ne.s32.totalorder %s145, %s146
      %p157 = scmp.eq.s32.totalorder %s17, 0
      %p158 = por %p156, %p157
      %p159 = scmp.ne.s32.totalorder %s145, %s146
      %p160 = scmp.eq.s32.totalorder %s18, 1
      %p161 = por %p159, %p160
      %p163 = scmp.ne.s32.totalorder %s146, %s162
      %p164 = scmp.eq.s32.totalorder %s18, 0
      %p165 = por %p163, %p164
      %p166 = scmp.le.s32.totalorder 1, %s12
      %p167 = scmp.lt.s32.totalorder %s12, 3
      %p168 = pnand %p166, %p167
      %p169 = pneg %p168
      // Predicated region
      $region9: #{up_forward.5} parent=5 // pred_check
        _
      $region10: #{up_forward.5} parent=5 // pred_check_branch
        %171 = sbr.rel (%p168) target = $region12
      $region11: #{up_forward.5} parent=5 // pred_region
        %s172 = ssub.s32 %s12, 1
        // Predicated region
        $region13: #{up_forward.5} parent=11 // pred_check
          %p173 = pneg %p59
        $region14: #{up_forward.5} parent=11 // pred_check_branch
          %175 = sbr.rel (%p173) target = $region16
        $region15: #{up_forward.5} parent=11 // pred_region
          _
        $region16: #{up_forward.5} parent=11 // pred_fallthru
          _
        // Predicated region
        $region17: #{up_forward.5} parent=11 // pred_check
          %p176 = pneg %p80
        $region18: #{up_forward.5} parent=11 // pred_check_branch
          %178 = sbr.rel (%p176) target = $region20
        $region19: #{up_forward.5} parent=11 // pred_region
          _
        $region20: #{up_forward.5} parent=11 // pred_fallthru
          _
      $region12: #{up_forward.5} parent=5 // pred_fallthru
        _
      %p179 = scmp.lt.s32.totalorder %s12, 2
      // Predicated region
      $region21: #{up_forward.5} parent=5 // pred_check
        %p180 = pneg %p179
      $region22: #{up_forward.5} parent=5 // pred_check_branch
        %182 = sbr.rel (%p180) target = $region24
      $region23: #{up_forward.5} parent=5 // pred_region
        // Predicated region
        $region25: #{up_forward.5} parent=23 // pred_check
          %p183 = pneg %p32
        $region26: #{up_forward.5} parent=23 // pred_check_branch
          %185 = sbr.rel (%p183) target = $region28
        $region27: #{up_forward.5} parent=23 // pred_region
          %s186 = sand.u32 %s22, 1
          %s187 = sand.u32 %s22, 1
          %s188 = smul.addr %s187, 40
          %s189 = scalar_lea.vmem [#allocation2], %s188
          %s190 = smul.u32 2, %s12
          %s191 = smul.addr %s190, 4
          %s192 = scalar_lea.vmem %s0, %s191
          // Predicated region
          $region29: #{up_forward.5} parent=27 // pred_check
            _
          $region30: #{up_forward.5} parent=27 // pred_check_branch
            %194 = sbr.rel (0) target = $region32
          $region31: #{up_forward.5} parent=27 // pred_region
            // Predicated region
            $region33: #{up_forward.5} parent=31 // pred_check
              _
            $region34: #{up_forward.5} parent=31 // pred_check_branch
              %196 = sbr.rel (0) target = $region36
            $region35: #{up_forward.5} parent=31 // pred_region
              // Predicated region
              $region48: #{up_forward.5} parent=35 // pred_check
                _
              $region49: #{up_forward.5} parent=35 // pred_check_branch
                %219 = sbr.rel (0) target = $region51
              $region50: #{up_forward.5} parent=35 // pred_region
                loop: start=0, step=1, limit=1
                $region52: #{up_forward.5} parent=50 // loop_pre_header
                  _
                $region53: #{up_forward.5} parent=50 // loop_header
                  %s221 = sphi 0, %s225
                  %p222 = scmp.ge.s32.totalorder %s221, 1
                  %s226 = sphi %s192, %s192
                  %s227 = sphi %s189, %s189
                $region54: #{up_forward.5} parent=50 // loop_header_branch
                  %224 = sbr.rel (%p222) target = $region58
                $region55: #{up_forward.5} parent=50 // loop_body
                  %v228 = vld [vmem:[%s226] sm:$0xff]
                  %229 = vst [vmem:[%s227] sm:$0xff] %v228
                  %v230 = vld [vmem:[%s226 + $0x10] sm:$0xff]
                  %231 = vst [vmem:[%s227 + $0x8] sm:$0xff] %v230
                  %v232 = vld [vmem:[%s226 + $0x20] sm:$0xff]
                  %233 = vst [vmem:[%s227 + $0x10] sm:$0xff] %v232
                  %v234 = vld [vmem:[%s226 + $0x30] sm:$0xff]
                  %235 = vst [vmem:[%s227 + $0x18] sm:$0xff] %v234
                  %v236 = vld [vmem:[%s226 + $0x40] sm:$0xff]
                  %237 = vst [vmem:[%s227 + $0x20] sm:$0xff] %v236
                $region56: #{up_forward.5} parent=50 // loop_footer
                  %s225 = sadd.s32 1, %s221
                $region57: #{up_forward.5} parent=50 // loop_footer_branch
                  %220 = sbr.rel target = $region53
                $region58: #{up_forward.5} parent=50 // loop_exit
                  _
              $region51: #{up_forward.5} parent=35 // pred_fallthru
                _
              // Predicated region
              $region59: #{up_forward.5} parent=35 // pred_check
                _
              $region60: #{up_forward.5} parent=35 // pred_check_branch
                %239 = sbr.rel target = $region62
              $region61: #{up_forward.5} parent=35 // pred_region
                _
              $region62: #{up_forward.5} parent=35 // pred_fallthru
                _
            $region36: #{up_forward.5} parent=31 // pred_fallthru
              _
            // Predicated region
            $region37: #{up_forward.5} parent=31 // pred_check
              _
            $region38: #{up_forward.5} parent=31 // pred_check_branch
              %198 = sbr.rel target = $region40
            $region39: #{up_forward.5} parent=31 // pred_region
              loop: start=0, step=1, limit=1
              $region41: #{up_forward.5} parent=39 // loop_pre_header
                _
              $region42: #{up_forward.5} parent=39 // loop_header
                %s201 = sphi 0, %s205
                %p202 = scmp.ge.s32.totalorder %s201, 1
                %s206 = sphi %s192, %s192
                %s207 = sphi %s189, %s189
              $region43: #{up_forward.5} parent=39 // loop_header_branch
                %204 = sbr.rel (%p202) target = $region47
              $region44: #{up_forward.5} parent=39 // loop_body
                %v208 = vld [vmem:[%s206] sm:$0xff]
                %209 = vst [vmem:[%s207] sm:$0xff] %v208
                %v210 = vld [vmem:[%s206 + $0x10] sm:$0xff]
                %211 = vst [vmem:[%s207 + $0x8] sm:$0xff] %v210
                %v212 = vld [vmem:[%s206 + $0x20] sm:$0xff]
                %213 = vst [vmem:[%s207 + $0x10] sm:$0xff] %v212
                %v214 = vld [vmem:[%s206 + $0x30] sm:$0xff]
                %215 = vst [vmem:[%s207 + $0x18] sm:$0xff] %v214
                %v216 = vld [vmem:[%s206 + $0x40] sm:$0xff]
                %217 = vst [vmem:[%s207 + $0x20] sm:$0xff] %v216
              $region45: #{up_forward.5} parent=39 // loop_footer
                %s205 = sadd.s32 1, %s201
              $region46: #{up_forward.5} parent=39 // loop_footer_branch
                %200 = sbr.rel target = $region42
              $region47: #{up_forward.5} parent=39 // loop_exit
                _
            $region40: #{up_forward.5} parent=31 // pred_fallthru
              _
          $region32: #{up_forward.5} parent=27 // pred_fallthru
            _
          %240 = vnop
        $region28: #{up_forward.5} parent=23 // pred_fallthru
          _
      $region24: #{up_forward.5} parent=5 // pred_fallthru
        _
      %p241 = scmp.le.s32.totalorder 1, %s12
      %p242 = scmp.lt.s32.totalorder %s12, 3
      %p243 = pnand %p241, %p242
      %p244 = pneg %p243
      // Predicated region
      $region63: #{up_forward.5} parent=5 // pred_check
        _
      $region64: #{up_forward.5} parent=5 // pred_check_branch
        %246 = sbr.rel (%p243) target = $region66
      $region65: #{up_forward.5} parent=5 // pred_region
        %s247 = ssub.s32 %s12, 1
        %s248 = sand.u32 %s25, 1
        %s249 = sand.u32 %s25, 1
        %s250 = smul.addr %s249, 40
        %s251 = scalar_lea.vmem [#allocation2], %s250
        // Predicated region
        $region67: #{up_forward.5} parent=65 // pred_check
          %p252 = pneg %p38
        $region68: #{up_forward.5} parent=65 // pred_check_branch
          %254 = sbr.rel (%p252) target = $region70
        $region69: #{up_forward.5} parent=65 // pred_region
          _
        $region70: #{up_forward.5} parent=65 // pred_fallthru
          _
        %s255 = sand.u32 %s25, 1
        %s256 = sand.u32 %s25, 1
        %s257 = smul.addr %s256, 40
        %s258 = scalar_lea.vmem [#allocation2], %s257
        %p259 = pneg %p38
        %p260 = pneg %p35
        %p261 = pneg %p59
        %p262 = pneg %p56
        %p263 = pneg %p80
        %p264 = pneg %p77
        %p265 = pneg %p106
        %p266 = pneg %p103
        %s267 = smul.u32 2, %s17
        %p268 = scmp.lt.s32.totalorder %s267, 3
        %s269 = scalar_select %p268, %s267, 3
        %s270 = smul.addr %s269, 8
        %s271 = scalar_lea.vmem %s3, %s270
        %p272 = pneg %p132
        %p273 = pneg %p129
        %p274 = scmp.lt.s32.totalorder %s17, 1
        %s275 = scalar_select %p274, %s17, 1
        %s276 = smul.addr %s275, 8
        %s277 = scalar_lea.vmem %s4, %s276
        %p278 = pneg %p158
        %p279 = pneg %p155
        %p280 = scmp.lt.s32.totalorder %s17, 1
        %s281 = scalar_select %p280, %s17, 1
        %s282 = smul.addr %s281, 8
        %s283 = scalar_lea.vmem %s5, %s282
        %s284 = smul.u32 2, %s17
        %s285 = smul.u32 2, %s17
        %p286 = scmp.lt.s32.totalorder %s285, 3
        %s287 = scalar_select %p286, %s285, 3
        %s288 = smul.addr %s287, 8
        %s289 = scalar_lea.vmem %s3, %s288
        %s290 = smul.u32 2, %s17
        %p291 = scmp.lt.s32.totalorder %s17, 1
        %s292 = scalar_select %p291, %s17, 1
        %s293 = smul.addr %s292, 8
        %s294 = scalar_lea.vmem %s4, %s293
        %p295 = scmp.lt.s32.totalorder %s17, 1
        %s296 = scalar_select %p295, %s17, 1
        %s297 = smul.addr %s296, 8
        %s298 = scalar_lea.vmem %s5, %s297
        %v300 = vld [vmem:[%s1] sm:$0xf]
        %v301 = vld [vmem:[%s251] sm:$0xff]
        %v302 = vld [vmem:[%s251 + $0x8] sm:$0xff]
        %v303 = vld [vmem:[%s251 + $0x10] sm:$0xff]
        %v304 = vld [vmem:[%s251 + $0x18] sm:$0xff]
        %v305 = vld [vmem:[%s251 + $0x20] sm:$0x33]
        %v306 = vld [vmem:[%s2] sm:$0xff]
        %308 = vset.pattern.permute.xlu0 0
        %309 = vperm.xlu0 %308, %v306
        %v310 = vpop.permute.xlu0 %309
        %v317 = vunpack.c.l.b16 %v301
        %v318 = vunpack.c.h.b16 %v301
        %v319 = vunpack.c.l.b16 %v302
        %v320 = vunpack.c.h.b16 %v302
        %v321 = vunpack.c.l.b16 %v303
        %v322 = vunpack.c.h.b16 %v303
        %v323 = vunpack.c.l.b16 %v304
        %v324 = vunpack.c.h.b16 %v304
        %v325 = vunpack.c.l.b16 %v305
        %v326 = vunpack.c.h.b16 %v305
        %v327 = vpack.c.b16 %v319, %v317
        %v328 = vpack.c.b16 %v320, %v318
        %v329 = vpack.c.b16 %v323, %v321
        %v330 = vpack.c.b16 %v324, %v322
        %v331 = vpack.c.b16 %v325, %v325
        %v332 = vpack.c.b16 %v326, %v326
        %vm337 = vcmask 293888
        %v339 = vsel %vm337, %v300, 0
        %vm341 = vcmask 1041408
        %v343 = vsel %vm341, %v331, 0
        %v346 = vsel %vm341, %v332, 0
        %348 = vmatprep.subr.bf16.mxu0 %v328
        %349 = vmatpush1.bf16.msra.mxu0 %v327
        %350 = vmatprep.subr.bf16.mxu0 %v330
        %351 = vmatpush1.bf16.msra.mxu0 %v329
        %352 = vmatprep.subr.bf16.mxu0 %v346
        %353 = vmatpush1.bf16.msra.mxu0 %v343
        %354 = vmatprep.subr.bf16.mxu0 0
        %355 = vmatpush1.bf16.msra.mxu0 0
        %356 = vmatprep.subr.bf16.mxu0 0
        %357 = vmatpush1.bf16.msra.mxu0 0
        %358 = vmatprep.subr.bf16.mxu0 0
        %359 = vmatpush1.bf16.msra.mxu0 0
        %360 = vmatprep.subr.bf16.mxu0 0
        %361 = vmatpush1.bf16.msra.mxu0 0
        %362 = vmatprep.subr.bf16.mxu0 0
        %363 = vmatpush1.bf16.msra.mxu0 0
        %364 = vmatprep.subr.bf16.mxu0 0
        %365 = vmatpush1.bf16.msra.mxu0 0
        %366 = vmatprep.subr.bf16.mxu0 0
        %367 = vmatpush1.bf16.msra.mxu0 0
        %368 = vmatprep.subr.bf16.mxu0 0
        %369 = vmatpush1.bf16.msra.mxu0 0
        %370 = vmatprep.subr.bf16.mxu0 0
        %371 = vmatpush1.bf16.msra.mxu0 0
        %372 = vmatprep.subr.bf16.mxu0 0
        %373 = vmatpush1.bf16.msra.mxu0 0
        %374 = vmatprep.subr.bf16.mxu0 0
        %375 = vmatpush1.bf16.msra.mxu0 0
        %376 = vmatprep.subr.bf16.mxu0 0
        %377 = vmatpush1.bf16.msra.mxu0 0
        %378 = vmatprep.subr.bf16.mxu0 0
        %379 = vmatpush1.bf16.msra.mxu0 0
        %380 = vmatprep.mubr.bf16.mxu0 0
        %381 = vmatmul.mubr.bf16.gmra.mrb[0].mxu0 %v339
        %v382 = vpop.f32.mrb[0].mxu0
        %v383 = vadd.f32 %v310, %v382
        %v384 = vpop.f32.mrb[0].mxu0
        %v385 = vadd.f32 %v310, %v384
        %v386 = vpop.f32.mrb[0].mxu0
        %v387 = vpop.f32.mrb[0].mxu0
        %388 = vdwg.mxu0
        %389 = vst [vmem:[%s289] sm:$0xff] %v383
        %390 = vst [vmem:[%s289 + $0x8] sm:$0xff] %v385
        %v391 = vadd.f32 %v383, %v385
        %392 = vadd.xlane.f32.xlu0 %v391
        %v393 = vpop.xlane.xlu0 %392
        %vm394 = vcmask 7168
        %395 = vst.msk [vmem:[%s294] sm:$0xff] %vm394, %v393
        %v396 = vmul.f32 %v383, %v383
        %v397 = vmul.f32 %v385, %v385
        %v398 = vadd.f32 %v396, %v397
        %399 = vadd.xlane.f32.xlu0 %v398
        %v400 = vpop.xlane.xlu0 %399
        %401 = vst.msk [vmem:[%s298] sm:$0xff] %vm394, %v400
        %s402 = smul.u32 2, %s17
        %p403 = scmp.lt.s32.totalorder %s402, 3
        %s404 = scalar_select %p403, %s402, 3
        %s405 = smul.addr %s404, 8
        %s406 = scalar_lea.vmem %s3, %s405
        %p407 = scmp.lt.s32.totalorder %s17, 1
        %s408 = scalar_select %p407, %s17, 1
        %s409 = smul.addr %s408, 8
        %s410 = scalar_lea.vmem %s4, %s409
        %p411 = scmp.lt.s32.totalorder %s17, 1
        %s412 = scalar_select %p411, %s17, 1
        %s413 = smul.addr %s412, 8
        %s414 = scalar_lea.vmem %s5, %s413
        // Predicated region
        $region71: #{up_forward.5} parent=65 // pred_check
          %p415 = pneg %p103
        $region72: #{up_forward.5} parent=65 // pred_check_branch
          %417 = sbr.rel (%p415) target = $region74
        $region73: #{up_forward.5} parent=65 // pred_region
          %s418 = smul.u32 2, %s17
        $region74: #{up_forward.5} parent=65 // pred_fallthru
          _
        // Predicated region
        $region75: #{up_forward.5} parent=65 // pred_check
          %p419 = pneg %p129
        $region76: #{up_forward.5} parent=65 // pred_check_branch
          %421 = sbr.rel (%p419) target = $region78
        $region77: #{up_forward.5} parent=65 // pred_region
          _
        $region78: #{up_forward.5} parent=65 // pred_fallthru
          _
        // Predicated region
        $region79: #{up_forward.5} parent=65 // pred_check
          %p422 = pneg %p155
        $region80: #{up_forward.5} parent=65 // pred_check_branch
          %424 = sbr.rel (%p422) target = $region82
        $region81: #{up_forward.5} parent=65 // pred_region
          _
        $region82: #{up_forward.5} parent=65 // pred_fallthru
          _
      $region66: #{up_forward.5} parent=5 // pred_fallthru
        _
      %p425 = scmp.le.s32.totalorder 2, %s12
      // Predicated region
      $region83: #{up_forward.5} parent=5 // pred_check
        %p426 = pneg %p425
      $region84: #{up_forward.5} parent=5 // pred_check_branch
        %428 = sbr.rel (%p426) target = $region86
      $region85: #{up_forward.5} parent=5 // pred_region
        %s429 = ssub.s32 %s12, 2
        // Predicated region
        $region87: #{up_forward.5} parent=85 // pred_check
          %p430 = pneg %p109
        $region88: #{up_forward.5} parent=85 // pred_check_branch
          %432 = sbr.rel (%p430) target = $region90
        $region89: #{up_forward.5} parent=85 // pred_region
          %s433 = smul.u32 2, %s18
          %p434 = scmp.lt.s32.totalorder %s433, 3
          %s435 = scalar_select %p434, %s433, 3
          %s436 = smul.addr %s435, 8
          %s437 = scalar_lea.vmem %s3, %s436
        $region90: #{up_forward.5} parent=85 // pred_fallthru
          _
        // Predicated region
        $region91: #{up_forward.5} parent=85 // pred_check
          %p438 = pneg %p135
        $region92: #{up_forward.5} parent=85 // pred_check_branch
          %440 = sbr.rel (%p438) target = $region94
        $region93: #{up_forward.5} parent=85 // pred_region
          %p441 = scmp.lt.s32.totalorder %s18, 1
          %s442 = scalar_select %p441, %s18, 1
          %s443 = smul.addr %s442, 8
          %s444 = scalar_lea.vmem %s4, %s443
        $region94: #{up_forward.5} parent=85 // pred_fallthru
          _
        // Predicated region
        $region95: #{up_forward.5} parent=85 // pred_check
          %p445 = pneg %p161
        $region96: #{up_forward.5} parent=85 // pred_check_branch
          %447 = sbr.rel (%p445) target = $region98
        $region97: #{up_forward.5} parent=85 // pred_region
          %p448 = scmp.lt.s32.totalorder %s18, 1
          %s449 = scalar_select %p448, %s18, 1
          %s450 = smul.addr %s449, 8
          %s451 = scalar_lea.vmem %s5, %s450
        $region98: #{up_forward.5} parent=85 // pred_fallthru
          _
      $region86: #{up_forward.5} parent=5 // pred_fallthru
        _
    $region6: #{up_forward.5} parent=1 // loop_footer
      %s16 = sadd.s32 1, %s12
    $region7: #{up_forward.5} parent=1 // loop_footer_branch
      %11 = sbr.rel target = $region3
    $region8: #{up_forward.5} parent=1 // loop_exit
      _

// kernel: up_forward.6
$region0: #{up_forward.6}
  #allocation0 [shape = 'u32[]', space=smem, size = 0x4, offset = 0x4, fixed_abs, tag = 'smem constant byte address 0x4 - core index']
  #allocation1 [shape = 'u32[144,128]{1,0:T(1,128)}', space=vmem, size = 0x12000, scoped, tag = 'internal scratch']
  %s0 = inlined_call_operand.vmem [shape: f32[8,512], index: 0, kind: input, shape index: {}]
  %s1 = inlined_call_operand.vmem [shape: f32[8,1], index: 1, kind: input, shape index: {}]
  %s2 = inlined_call_operand.vmem [shape: f32[8,1], index: 2, kind: input, shape index: {}]
  %s3 = inlined_call_operand.vmem [shape: f32[8,1], index: 3, kind: input, shape index: {}]
  %s4 = inlined_call_operand.vmem [shape: f32[8,1], index: 4, kind: input, shape index: {}]
  %s5 = inlined_call_operand.vmem [shape: bf16[8,512], index: 5, kind: output, shape index: {}]
  %s6 = sld [smem:[#allocation0]]
  $region53: #{up_forward.6} parent=0
    _
  %s8 = ssub.s32 1, %s6
  %s9 = scalar_select 0, %s8, %s6
  loop: start=0, step=1, limit=4
  $region2: #{up_forward.6} parent=0 // loop_pre_header
    _
  $region3: #{up_forward.6} parent=0 // loop_header
    %s11 = sphi 0, %s15
    %p12 = scmp.ge.s32.totalorder %s11, 4
    %s21 = sphi 0, %s23
    %s24 = sphi 0, %s21
    %s25 = sphi 0, %s24
    %s41 = sphi 0, %s25
    %s45 = sphi 0, %s45
    %s47 = sphi 0, %s45
    %s48 = sphi 0, %s47
    %s62 = sphi 0, %s48
    %s66 = sphi 0, %s66
    %s68 = sphi 0, %s66
    %s69 = sphi 0, %s68
    %s83 = sphi 0, %s69
    %s87 = sphi 0, %s87
    %s89 = sphi 0, %s87
    %s90 = sphi 0, %s89
    %s104 = sphi 0, %s90
    %s108 = sphi 0, %s108
    %s110 = sphi 0, %s108
    %s111 = sphi 0, %s110
    %s125 = sphi 0, %s111
    %s131 = sphi 0, %s133
    %s134 = sphi 0, %s131
    %s135 = sphi 0, %s134
    %s151 = sphi 0, %s135
  $region4: #{up_forward.6} parent=0 // loop_header_branch
    %14 = sbr.rel (%p12) target = $region8
  $region5: #{up_forward.6} parent=0 // loop_body
    %s16 = ssub.s32 %s11, 1
    %s17 = ssub.s32 %s11, 2
    %s18 = sadd.s32 %s11, 1
    %s19 = ssub.s32 %s11, %s18
    %p20 = scmp.eq.s32.totalorder %s19, 0
    %s22 = sadd.s32 %s21, 1
    %s23 = scalar_select %p20, %s21, %s22
    %p26 = pneg %p20
    %p27 = scmp.eq.s32.totalorder %s11, 1
    %p28 = por %p26, %p27
    %p29 = scmp.ne.s32.totalorder %s21, %s24
    %p30 = scmp.eq.s32.totalorder %s11, 0
    %p31 = por %p29, %p30
    %p32 = scmp.ne.s32.totalorder %s21, %s24
    %p33 = scmp.eq.s32.totalorder %s16, 1
    %p34 = por %p32, %p33
    %p35 = scmp.ne.s32.totalorder %s24, %s25
    %p36 = scmp.eq.s32.totalorder %s16, 0
    %p37 = por %p35, %p36
    %p38 = scmp.ne.s32.totalorder %s24, %s25
    %p39 = scmp.eq.s32.totalorder %s17, 1
    %p40 = por %p38, %p39
    %p42 = scmp.ne.s32.totalorder %s25, %s41
    %p43 = scmp.eq.s32.totalorder %s17, 0
    %p44 = por %p42, %p43
    %s46 = sadd.s32 %s45, 1
    %p49 = scmp.eq.s32.totalorder %s11, 1
    %p50 = scmp.ne.s32.totalorder %s45, %s47
    %p51 = scmp.eq.s32.totalorder %s11, 0
    %p52 = por %p50, %p51
    %p53 = scmp.ne.s32.totalorder %s45, %s47
    %p54 = scmp.eq.s32.totalorder %s16, 1
    %p55 = por %p53, %p54
    %p56 = scmp.ne.s32.totalorder %s47, %s48
    %p57 = scmp.eq.s32.totalorder %s16, 0
    %p58 = por %p56, %p57
    %p59 = scmp.ne.s32.totalorder %s47, %s48
    %p60 = scmp.eq.s32.totalorder %s17, 1
    %p61 = por %p59, %p60
    %p63 = scmp.ne.s32.totalorder %s48, %s62
    %p64 = scmp.eq.s32.totalorder %s17, 0
    %p65 = por %p63, %p64
    %s67 = sadd.s32 %s66, 1
    %p70 = scmp.eq.s32.totalorder %s11, 1
    %p71 = scmp.ne.s32.totalorder %s66, %s68
    %p72 = scmp.eq.s32.totalorder %s11, 0
    %p73 = por %p71, %p72
    %p74 = scmp.ne.s32.totalorder %s66, %s68
    %p75 = scmp.eq.s32.totalorder %s16, 1
    %p76 = por %p74, %p75
    %p77 = scmp.ne.s32.totalorder %s68, %s69
    %p78 = scmp.eq.s32.totalorder %s16, 0
    %p79 = por %p77, %p78
    %p80 = scmp.ne.s32.totalorder %s68, %s69
    %p81 = scmp.eq.s32.totalorder %s17, 1
    %p82 = por %p80, %p81
    %p84 = scmp.ne.s32.totalorder %s69, %s83
    %p85 = scmp.eq.s32.totalorder %s17, 0
    %p86 = por %p84, %p85
    %s88 = sadd.s32 %s87, 1
    %p91 = scmp.eq.s32.totalorder %s11, 1
    %p92 = scmp.ne.s32.totalorder %s87, %s89
    %p93 = scmp.eq.s32.totalorder %s11, 0
    %p94 = por %p92, %p93
    %p95 = scmp.ne.s32.totalorder %s87, %s89
    %p96 = scmp.eq.s32.totalorder %s16, 1
    %p97 = por %p95, %p96
    %p98 = scmp.ne.s32.totalorder %s89, %s90
    %p99 = scmp.eq.s32.totalorder %s16, 0
    %p100 = por %p98, %p99
    %p101 = scmp.ne.s32.totalorder %s89, %s90
    %p102 = scmp.eq.s32.totalorder %s17, 1
    %p103 = por %p101, %p102
    %p105 = scmp.ne.s32.totalorder %s90, %s104
    %p106 = scmp.eq.s32.totalorder %s17, 0
    %p107 = por %p105, %p106
    %s109 = sadd.s32 %s108, 1
    %p112 = scmp.eq.s32.totalorder %s11, 1
    %p113 = scmp.ne.s32.totalorder %s108, %s110
    %p114 = scmp.eq.s32.totalorder %s11, 0
    %p115 = por %p113, %p114
    %p116 = scmp.ne.s32.totalorder %s108, %s110
    %p117 = scmp.eq.s32.totalorder %s16, 1
    %p118 = por %p116, %p117
    %p119 = scmp.ne.s32.totalorder %s110, %s111
    %p120 = scmp.eq.s32.totalorder %s16, 0
    %p121 = por %p119, %p120
    %p122 = scmp.ne.s32.totalorder %s110, %s111
    %p123 = scmp.eq.s32.totalorder %s17, 1
    %p124 = por %p122, %p123
    %p126 = scmp.ne.s32.totalorder %s111, %s125
    %p127 = scmp.eq.s32.totalorder %s17, 0
    %p128 = por %p126, %p127
    %s129 = ssub.s32 %s11, %s18
    %p130 = scmp.eq.s32.totalorder %s129, 0
    %s132 = sadd.s32 %s131, 1
    %s133 = scalar_select %p130, %s131, %s132
    %p136 = pneg %p130
    %p137 = scmp.eq.s32.totalorder %s11, 1
    %p138 = por %p136, %p137
    %p139 = scmp.ne.s32.totalorder %s131, %s134
    %p140 = scmp.eq.s32.totalorder %s11, 0
    %p141 = por %p139, %p140
    %p142 = scmp.ne.s32.totalorder %s131, %s134
    %p143 = scmp.eq.s32.totalorder %s16, 1
    %p144 = por %p142, %p143
    %p145 = scmp.ne.s32.totalorder %s134, %s135
    %p146 = scmp.eq.s32.totalorder %s16, 0
    %p147 = por %p145, %p146
    %p148 = scmp.ne.s32.totalorder %s134, %s135
    %p149 = scmp.eq.s32.totalorder %s17, 1
    %p150 = por %p148, %p149
    %p152 = scmp.ne.s32.totalorder %s135, %s151
    %p153 = scmp.eq.s32.totalorder %s17, 0
    %p154 = por %p152, %p153
    %p155 = scmp.le.s32.totalorder 1, %s11
    %p156 = scmp.lt.s32.totalorder %s11, 3
    %p157 = pnand %p155, %p156
    %p158 = pneg %p157
    // Predicated region
    $region9: #{up_forward.6} parent=5 // pred_check
      _
    $region10: #{up_forward.6} parent=5 // pred_check_branch
      %160 = sbr.rel (%p157) target = $region12
    $region11: #{up_forward.6} parent=5 // pred_region
      %s161 = ssub.s32 %s11, 1
      // Predicated region
      $region13: #{up_forward.6} parent=11 // pred_check
        %p162 = pneg %p58
      $region14: #{up_forward.6} parent=11 // pred_check_branch
        %164 = sbr.rel (%p162) target = $region16
      $region15: #{up_forward.6} parent=11 // pred_region
        _
      $region16: #{up_forward.6} parent=11 // pred_fallthru
        _
      // Predicated region
      $region17: #{up_forward.6} parent=11 // pred_check
        %p165 = pneg %p79
      $region18: #{up_forward.6} parent=11 // pred_check_branch
        %167 = sbr.rel (%p165) target = $region20
      $region19: #{up_forward.6} parent=11 // pred_region
        _
      $region20: #{up_forward.6} parent=11 // pred_fallthru
        _
      // Predicated region
      $region21: #{up_forward.6} parent=11 // pred_check
        %p168 = pneg %p100
      $region22: #{up_forward.6} parent=11 // pred_check_branch
        %170 = sbr.rel (%p168) target = $region24
      $region23: #{up_forward.6} parent=11 // pred_region
        _
      $region24: #{up_forward.6} parent=11 // pred_fallthru
        _
      // Predicated region
      $region25: #{up_forward.6} parent=11 // pred_check
        %p171 = pneg %p121
      $region26: #{up_forward.6} parent=11 // pred_check_branch
        %173 = sbr.rel (%p171) target = $region28
      $region27: #{up_forward.6} parent=11 // pred_region
        _
      $region28: #{up_forward.6} parent=11 // pred_fallthru
        _
    $region12: #{up_forward.6} parent=5 // pred_fallthru
      _
    %p174 = scmp.lt.s32.totalorder %s11, 2
    // Predicated region
    $region29: #{up_forward.6} parent=5 // pred_check
      %p175 = pneg %p174
    $region30: #{up_forward.6} parent=5 // pred_check_branch
      %177 = sbr.rel (%p175) target = $region32
    $region31: #{up_forward.6} parent=5 // pred_region
      // Predicated region
      $region33: #{up_forward.6} parent=31 // pred_check
        %p178 = pneg %p31
      $region34: #{up_forward.6} parent=31 // pred_check_branch
        %180 = sbr.rel (%p178) target = $region36
      $region35: #{up_forward.6} parent=31 // pred_region
        %s181 = smul.u32 2, %s11
        %p182 = scmp.lt.s32.totalorder %s181, 3
        %s183 = scalar_select %p182, %s181, 3
        %s184 = smul.addr %s183, 8
        %s185 = scalar_lea.vmem %s0, %s184
        %s186 = smul.u32 2, %s11
      $region36: #{up_forward.6} parent=31 // pred_fallthru
        _
    $region32: #{up_forward.6} parent=5 // pred_fallthru
      _
    %p187 = scmp.le.s32.totalorder 1, %s11
    %p188 = scmp.lt.s32.totalorder %s11, 3
    %p189 = pnand %p187, %p188
    %p190 = pneg %p189
    // Predicated region
    $region37: #{up_forward.6} parent=5 // pred_check
      _
    $region38: #{up_forward.6} parent=5 // pred_check_branch
      %192 = sbr.rel (%p189) target = $region40
    $region39: #{up_forward.6} parent=5 // pred_region
      %s193 = ssub.s32 %s11, 1
      %s194 = smul.u32 2, %s16
      %p195 = scmp.lt.s32.totalorder %s194, 3
      %s196 = scalar_select %p195, %s194, 3
      %s197 = smul.addr %s196, 8
      %s198 = scalar_lea.vmem %s0, %s197
      %p199 = pneg %p37
      %p200 = pneg %p34
      %p201 = pneg %p58
      %p202 = pneg %p55
      %p203 = pneg %p79
      %p204 = pneg %p76
      %p205 = pneg %p100
      %p206 = pneg %p97
      %p207 = pneg %p121
      %p208 = pneg %p118
      %p209 = pneg %p147
      %p210 = pneg %p144
      %s211 = smul.u32 2, %s16
      %p212 = scmp.lt.s32.totalorder %s211, 3
      %s213 = scalar_select %p212, %s211, 3
      %s214 = smul.addr %s213, 4
      %s215 = scalar_lea.vmem %s5, %s214
      %s216 = smul.u32 2, %s16
      %p217 = scmp.lt.s32.totalorder %s216, 3
      %s218 = scalar_select %p217, %s216, 3
      %s219 = smul.addr %s218, 8
      %s220 = scalar_lea.vmem %s0, %s219
      %s221 = smul.u32 2, %s16
      %s222 = smul.u32 2, %s16
      %p223 = scmp.lt.s32.totalorder %s222, 3
      %s224 = scalar_select %p223, %s222, 3
      %s225 = smul.addr %s224, 4
      %s226 = scalar_lea.vmem %s5, %s225
      %s227 = smul.u32 2, %s16
      %v228 = vld [vmem:[%s2] sm:$0xff]
      %v229 = vadd.f32 %v228, 1e-05
      %v230 = vrsqrt.pop %v229
      %v231 = vld [vmem:[%s3] sm:$0xff]
      %v232 = vmul.f32 %v231, %v230
      %v233 = vld [vmem:[%s4] sm:$0xff]
      %v234 = vld [vmem:[%s1] sm:$0xff]
      %v235 = vmul.f32 %v234, %v232
      %v236 = vsub.f32 %v233, %v235
      %v237 = vld [vmem:[%s220] sm:$0xff]
      %v238 = vld [vmem:[%s220 + $0x8] sm:$0xff]
      %240 = vset.pattern.permute.xlu0 0
      %241 = vperm.xlu0 %240, %v232
      %v242 = vpop.permute.xlu0 %241
      %v244 = vmul.f32 %v237, %v242
      %v245 = vmul.f32 %v238, %v242
      %247 = vset.pattern.permute.xlu0 0
      %248 = vperm.xlu0 %247, %v236
      %v249 = vpop.permute.xlu0 %248
      %v251 = vadd.f32 %v244, %v249
      %v252 = vadd.f32 %v245, %v249
      %vm253 = vcmp.ge.f32.partialorder %v251, 0.0
      %vm254 = vcmp.ge.f32.partialorder %v252, 0.0
      %v255 = vmul.f32 %v251, 0.3
      %v256 = vmul.f32 %v252, 0.3
      %v257 = vsel %vm253, %v251, %v255
      %v258 = vsel %vm254, %v252, %v256
      %v259 = vpack.c.bf16 %v257, %v257
      %v260 = vpack.c.bf16 %v258, %v258
      %v263 = vunpack.c.l.b16 %v259
      %v264 = vunpack.c.l.b16 %v260
      %v265 = vpack.c.b16 %v264, %v263
      %267 = vst [vmem:[%s226] sm:$0xff] %v265
      %s268 = smul.u32 2, %s16
      %p269 = scmp.lt.s32.totalorder %s268, 3
      %s270 = scalar_select %p269, %s268, 3
      %s271 = smul.addr %s270, 4
      %s272 = scalar_lea.vmem %s5, %s271
      // Predicated region
      $region41: #{up_forward.6} parent=39 // pred_check
        %p273 = pneg %p144
      $region42: #{up_forward.6} parent=39 // pred_check_branch
        %275 = sbr.rel (%p273) target = $region44
      $region43: #{up_forward.6} parent=39 // pred_region
        %s276 = smul.u32 2, %s16
      $region44: #{up_forward.6} parent=39 // pred_fallthru
        _
    $region40: #{up_forward.6} parent=5 // pred_fallthru
      _
    %p277 = scmp.le.s32.totalorder 2, %s11
    // Predicated region
    $region45: #{up_forward.6} parent=5 // pred_check
      %p278 = pneg %p277
    $region46: #{up_forward.6} parent=5 // pred_check_branch
      %280 = sbr.rel (%p278) target = $region48
    $region47: #{up_forward.6} parent=5 // pred_region
      %s281 = ssub.s32 %s11, 2
      // Predicated region
      $region49: #{up_forward.6} parent=47 // pred_check
        %p282 = pneg %p150
      $region50: #{up_forward.6} parent=47 // pred_check_branch
        %284 = sbr.rel (%p282) target = $region52
      $region51: #{up_forward.6} parent=47 // pred_region
        %s285 = smul.u32 2, %s17
        %p286 = scmp.lt.s32.totalorder %s285, 3
        %s287 = scalar_select %p286, %s285, 3
        %s288 = smul.addr %s287, 4
        %s289 = scalar_lea.vmem %s5, %s288
      $region52: #{up_forward.6} parent=47 // pred_fallthru
        _
    $region48: #{up_forward.6} parent=5 // pred_fallthru
      _
  $region6: #{up_forward.6} parent=0 // loop_footer
    %s15 = sadd.s32 1, %s11
  $region7: #{up_forward.6} parent=0 // loop_footer_branch
    %10 = sbr.rel target = $region3
  $region8: #{up_forward.6} parent=0 // loop_exit
    _

// kernel: up_forward.7
$region0: #{up_forward.7}
  #allocation0 [shape = 'u32[]', space=smem, size = 0x4, offset = 0x4, fixed_abs, tag = 'smem constant byte address 0x4 - core index']
  #allocation1 [shape = 'u32[144,128]{1,0:T(1,128)}', space=vmem, size = 0x12000, scoped, tag = 'internal scratch']
  %s0 = inlined_call_operand.vmem [shape: bf16[72,512], index: 0, kind: input, shape index: {}]
  %s1 = inlined_call_operand.vmem [shape: bf16[8,72], index: 1, kind: input, shape index: {}]
  %s2 = inlined_call_operand.vmem [shape: f32[8,1], index: 2, kind: input, shape index: {}]
  %s3 = inlined_call_operand.vmem [shape: f32[8,512], index: 3, kind: output, shape index: {0}]
  %s4 = inlined_call_operand.vmem [shape: f32[2,8,1], index: 4, kind: output, shape index: {1}]
  %s5 = inlined_call_operand.vmem [shape: f32[2,8,1], index: 5, kind: output, shape index: {2}]
  %6 = xla_tuple %s3, %s4, %s5
  %s7 = sld [smem:[#allocation0]]
  $region99: #{up_forward.7} parent=0
    _
  %s9 = ssub.s32 1, %s7
  %s10 = scalar_select 0, %s9, %s7
  $region1: #{up_forward.7} parent=0
    #allocation2 [shape = 'u8[73728]{0}', space=vmem, size = 0x12000, scoped, tag = 'input window, operand 0']
    loop: start=0, step=1, limit=4
    $region2: #{up_forward.7} parent=1 // loop_pre_header
      _
    $region3: #{up_forward.7} parent=1 // loop_header
      %s12 = sphi 0, %s16
      %p13 = scmp.ge.s32.totalorder %s12, 4
      %s22 = sphi 0, %s24
      %s25 = sphi 0, %s22
      %s26 = sphi 0, %s25
      %s42 = sphi 0, %s26
      %s46 = sphi 0, %s46
      %s48 = sphi 0, %s46
      %s49 = sphi 0, %s48
      %s63 = sphi 0, %s49
      %s67 = sphi 0, %s67
      %s69 = sphi 0, %s67
      %s70 = sphi 0, %s69
      %s84 = sphi 0, %s70
      %s90 = sphi 0, %s92
      %s93 = sphi 0, %s90
      %s94 = sphi 0, %s93
      %s110 = sphi 0, %s94
      %s116 = sphi 0, %s118
      %s119 = sphi 0, %s116
      %s120 = sphi 0, %s119
      %s136 = sphi 0, %s120
      %s142 = sphi 0, %s144
      %s145 = sphi 0, %s142
      %s146 = sphi 0, %s145
      %s162 = sphi 0, %s146
    $region4: #{up_forward.7} parent=1 // loop_header_branch
      %15 = sbr.rel (%p13) target = $region8
    $region5: #{up_forward.7} parent=1 // loop_body
      %s17 = ssub.s32 %s12, 1
      %s18 = ssub.s32 %s12, 2
      %s19 = sadd.s32 %s12, 1
      %s20 = ssub.s32 %s12, %s19
      %p21 = scmp.eq.s32.totalorder %s20, 0
      %s23 = sadd.s32 %s22, 1
      %s24 = scalar_select %p21, %s22, %s23
      %p27 = pneg %p21
      %p28 = scmp.eq.s32.totalorder %s12, 1
      %p29 = por %p27, %p28
      %p30 = scmp.ne.s32.totalorder %s22, %s25
      %p31 = scmp.eq.s32.totalorder %s12, 0
      %p32 = por %p30, %p31
      %p33 = scmp.ne.s32.totalorder %s22, %s25
      %p34 = scmp.eq.s32.totalorder %s17, 1
      %p35 = por %p33, %p34
      %p36 = scmp.ne.s32.totalorder %s25, %s26
      %p37 = scmp.eq.s32.totalorder %s17, 0
      %p38 = por %p36, %p37
      %p39 = scmp.ne.s32.totalorder %s25, %s26
      %p40 = scmp.eq.s32.totalorder %s18, 1
      %p41 = por %p39, %p40
      %p43 = scmp.ne.s32.totalorder %s26, %s42
      %p44 = scmp.eq.s32.totalorder %s18, 0
      %p45 = por %p43, %p44
      %s47 = sadd.s32 %s46, 1
      %p50 = scmp.eq.s32.totalorder %s12, 1
      %p51 = scmp.ne.s32.totalorder %s46, %s48
      %p52 = scmp.eq.s32.totalorder %s12, 0
      %p53 = por %p51, %p52
      %p54 = scmp.ne.s32.totalorder %s46, %s48
      %p55 = scmp.eq.s32.totalorder %s17, 1
      %p56 = por %p54, %p55
      %p57 = scmp.ne.s32.totalorder %s48, %s49
      %p58 = scmp.eq.s32.totalorder %s17, 0
      %p59 = por %p57, %p58
      %p60 = scmp.ne.s32.totalorder %s48, %s49
      %p61 = scmp.eq.s32.totalorder %s18, 1
      %p62 = por %p60, %p61
      %p64 = scmp.ne.s32.totalorder %s49, %s63
      %p65 = scmp.eq.s32.totalorder %s18, 0
      %p66 = por %p64, %p65
      %s68 = sadd.s32 %s67, 1
      %p71 = scmp.eq.s32.totalorder %s12, 1
      %p72 = scmp.ne.s32.totalorder %s67, %s69
      %p73 = scmp.eq.s32.totalorder %s12, 0
      %p74 = por %p72, %p73
      %p75 = scmp.ne.s32.totalorder %s67, %s69
      %p76 = scmp.eq.s32.totalorder %s17, 1
      %p77 = por %p75, %p76
      %p78 = scmp.ne.s32.totalorder %s69, %s70
      %p79 = scmp.eq.s32.totalorder %s17, 0
      %p80 = por %p78, %p79
      %p81 = scmp.ne.s32.totalorder %s69, %s70
      %p82 = scmp.eq.s32.totalorder %s18, 1
      %p83 = por %p81, %p82
      %p85 = scmp.ne.s32.totalorder %s70, %s84
      %p86 = scmp.eq.s32.totalorder %s18, 0
      %p87 = por %p85, %p86
      %s88 = ssub.s32 %s12, %s19
      %p89 = scmp.eq.s32.totalorder %s88, 0
      %s91 = sadd.s32 %s90, 1
      %s92 = scalar_select %p89, %s90, %s91
      %p95 = pneg %p89
      %p96 = scmp.eq.s32.totalorder %s12, 1
      %p97 = por %p95, %p96
      %p98 = scmp.ne.s32.totalorder %s90, %s93
      %p99 = scmp.eq.s32.totalorder %s12, 0
      %p100 = por %p98, %p99
      %p101 = scmp.ne.s32.totalorder %s90, %s93
      %p102 = scmp.eq.s32.totalorder %s17, 1
      %p103 = por %p101, %p102
      %p104 = scmp.ne.s32.totalorder %s93, %s94
      %p105 = scmp.eq.s32.totalorder %s17, 0
      %p106 = por %p104, %p105
      %p107 = scmp.ne.s32.totalorder %s93, %s94
      %p108 = scmp.eq.s32.totalorder %s18, 1
      %p109 = por %p107, %p108
      %p111 = scmp.ne.s32.totalorder %s94, %s110
      %p112 = scmp.eq.s32.totalorder %s18, 0
      %p113 = por %p111, %p112
      %s114 = ssub.s32 %s12, %s19
      %p115 = scmp.eq.s32.totalorder %s114, 0
      %s117 = sadd.s32 %s116, 1
      %s118 = scalar_select %p115, %s116, %s117
      %p121 = pneg %p115
      %p122 = scmp.eq.s32.totalorder %s12, 1
      %p123 = por %p121, %p122
      %p124 = scmp.ne.s32.totalorder %s116, %s119
      %p125 = scmp.eq.s32.totalorder %s12, 0
      %p126 = por %p124, %p125
      %p127 = scmp.ne.s32.totalorder %s116, %s119
      %p128 = scmp.eq.s32.totalorder %s17, 1
      %p129 = por %p127, %p128
      %p130 = scmp.ne.s32.totalorder %s119, %s120
      %p131 = scmp.eq.s32.totalorder %s17, 0
      %p132 = por %p130, %p131
      %p133 = scmp.ne.s32.totalorder %s119, %s120
      %p134 = scmp.eq.s32.totalorder %s18, 1
      %p135 = por %p133, %p134
      %p137 = scmp.ne.s32.totalorder %s120, %s136
      %p138 = scmp.eq.s32.totalorder %s18, 0
      %p139 = por %p137, %p138
      %s140 = ssub.s32 %s12, %s19
      %p141 = scmp.eq.s32.totalorder %s140, 0
      %s143 = sadd.s32 %s142, 1
      %s144 = scalar_select %p141, %s142, %s143
      %p147 = pneg %p141
      %p148 = scmp.eq.s32.totalorder %s12, 1
      %p149 = por %p147, %p148
      %p150 = scmp.ne.s32.totalorder %s142, %s145
      %p151 = scmp.eq.s32.totalorder %s12, 0
      %p152 = por %p150, %p151
      %p153 = scmp.ne.s32.totalorder %s142, %s145
      %p154 = scmp.eq.s32.totalorder %s17, 1
      %p155 = por %p153, %p154
      %p156 = scmp.ne.s32.totalorder %s145, %s146
      %p157 = scmp.eq.s32.totalorder %s17, 0
      %p158 = por %p156, %p157
      %p159 = scmp.ne.s32.totalorder %s145, %s146
      %p160 = scmp.eq.s32.totalorder %s18, 1
      %p161 = por %p159, %p160
      %p163 = scmp.ne.s32.totalorder %s146, %s162
      %p164 = scmp.eq.s32.totalorder %s18, 0
      %p165 = por %p163, %p164
      %p166 = scmp.le.s32.totalorder 1, %s12
      %p167 = scmp.lt.s32.totalorder %s12, 3
      %p168 = pnand %p166, %p167
      %p169 = pneg %p168
      // Predicated region
      $region9: #{up_forward.7} parent=5 // pred_check
        _
      $region10: #{up_forward.7} parent=5 // pred_check_branch
        %171 = sbr.rel (%p168) target = $region12
      $region11: #{up_forward.7} parent=5 // pred_region
        %s172 = ssub.s32 %s12, 1
        // Predicated region
        $region13: #{up_forward.7} parent=11 // pred_check
          %p173 = pneg %p59
        $region14: #{up_forward.7} parent=11 // pred_check_branch
          %175 = sbr.rel (%p173) target = $region16
        $region15: #{up_forward.7} parent=11 // pred_region
          _
        $region16: #{up_forward.7} parent=11 // pred_fallthru
          _
        // Predicated region
        $region17: #{up_forward.7} parent=11 // pred_check
          %p176 = pneg %p80
        $region18: #{up_forward.7} parent=11 // pred_check_branch
          %178 = sbr.rel (%p176) target = $region20
        $region19: #{up_forward.7} parent=11 // pred_region
          _
        $region20: #{up_forward.7} parent=11 // pred_fallthru
          _
      $region12: #{up_forward.7} parent=5 // pred_fallthru
        _
      %p179 = scmp.lt.s32.totalorder %s12, 2
      // Predicated region
      $region21: #{up_forward.7} parent=5 // pred_check
        %p180 = pneg %p179
      $region22: #{up_forward.7} parent=5 // pred_check_branch
        %182 = sbr.rel (%p180) target = $region24
      $region23: #{up_forward.7} parent=5 // pred_region
        // Predicated region
        $region25: #{up_forward.7} parent=23 // pred_check
          %p183 = pneg %p32
        $region26: #{up_forward.7} parent=23 // pred_check_branch
          %185 = sbr.rel (%p183) target = $region28
        $region27: #{up_forward.7} parent=23 // pred_region
          %s186 = sand.u32 %s22, 1
          %s187 = sand.u32 %s22, 1
          %s188 = smul.addr %s187, 72
          %s189 = scalar_lea.vmem [#allocation2], %s188
          %s190 = smul.u32 2, %s12
          %s191 = smul.addr %s190, 4
          %s192 = scalar_lea.vmem %s0, %s191
          // Predicated region
          $region29: #{up_forward.7} parent=27 // pred_check
            _
          $region30: #{up_forward.7} parent=27 // pred_check_branch
            %194 = sbr.rel (0) target = $region32
          $region31: #{up_forward.7} parent=27 // pred_region
            // Predicated region
            $region33: #{up_forward.7} parent=31 // pred_check
              _
            $region34: #{up_forward.7} parent=31 // pred_check_branch
              %196 = sbr.rel (0) target = $region36
            $region35: #{up_forward.7} parent=31 // pred_region
              // Predicated region
              $region48: #{up_forward.7} parent=35 // pred_check
                _
              $region49: #{up_forward.7} parent=35 // pred_check_branch
                %227 = sbr.rel (0) target = $region51
              $region50: #{up_forward.7} parent=35 // pred_region
                loop: start=0, step=1, limit=1
                $region52: #{up_forward.7} parent=50 // loop_pre_header
                  _
                $region53: #{up_forward.7} parent=50 // loop_header
                  %s229 = sphi 0, %s233
                  %p230 = scmp.ge.s32.totalorder %s229, 1
                  %s234 = sphi %s192, %s192
                  %s235 = sphi %s189, %s189
                $region54: #{up_forward.7} parent=50 // loop_header_branch
                  %232 = sbr.rel (%p230) target = $region58
                $region55: #{up_forward.7} parent=50 // loop_body
                  %v236 = vld [vmem:[%s234] sm:$0xff]
                  %237 = vst [vmem:[%s235] sm:$0xff] %v236
                  %v238 = vld [vmem:[%s234 + $0x10] sm:$0xff]
                  %239 = vst [vmem:[%s235 + $0x8] sm:$0xff] %v238
                  %v240 = vld [vmem:[%s234 + $0x20] sm:$0xff]
                  %241 = vst [vmem:[%s235 + $0x10] sm:$0xff] %v240
                  %v242 = vld [vmem:[%s234 + $0x30] sm:$0xff]
                  %243 = vst [vmem:[%s235 + $0x18] sm:$0xff] %v242
                  %v244 = vld [vmem:[%s234 + $0x40] sm:$0xff]
                  %245 = vst [vmem:[%s235 + $0x20] sm:$0xff] %v244
                  %v246 = vld [vmem:[%s234 + $0x50] sm:$0xff]
                  %247 = vst [vmem:[%s235 + $0x28] sm:$0xff] %v246
                  %v248 = vld [vmem:[%s234 + $0x60] sm:$0xff]
                  %249 = vst [vmem:[%s235 + $0x30] sm:$0xff] %v248
                  %v250 = vld [vmem:[%s234 + $0x70] sm:$0xff]
                  %251 = vst [vmem:[%s235 + $0x38] sm:$0xff] %v250
                  %v252 = vld [vmem:[%s234 + $0x80] sm:$0xff]
                  %253 = vst [vmem:[%s235 + $0x40] sm:$0xff] %v252
                $region56: #{up_forward.7} parent=50 // loop_footer
                  %s233 = sadd.s32 1, %s229
                $region57: #{up_forward.7} parent=50 // loop_footer_branch
                  %228 = sbr.rel target = $region53
                $region58: #{up_forward.7} parent=50 // loop_exit
                  _
              $region51: #{up_forward.7} parent=35 // pred_fallthru
                _
              // Predicated region
              $region59: #{up_forward.7} parent=35 // pred_check
                _
              $region60: #{up_forward.7} parent=35 // pred_check_branch
                %255 = sbr.rel target = $region62
              $region61: #{up_forward.7} parent=35 // pred_region
                _
              $region62: #{up_forward.7} parent=35 // pred_fallthru
                _
            $region36: #{up_forward.7} parent=31 // pred_fallthru
              _
            // Predicated region
            $region37: #{up_forward.7} parent=31 // pred_check
              _
            $region38: #{up_forward.7} parent=31 // pred_check_branch
              %198 = sbr.rel target = $region40
            $region39: #{up_forward.7} parent=31 // pred_region
              loop: start=0, step=1, limit=1
              $region41: #{up_forward.7} parent=39 // loop_pre_header
                _
              $region42: #{up_forward.7} parent=39 // loop_header
                %s201 = sphi 0, %s205
                %p202 = scmp.ge.s32.totalorder %s201, 1
                %s206 = sphi %s192, %s192
                %s207 = sphi %s189, %s189
              $region43: #{up_forward.7} parent=39 // loop_header_branch
                %204 = sbr.rel (%p202) target = $region47
              $region44: #{up_forward.7} parent=39 // loop_body
                %v208 = vld [vmem:[%s206] sm:$0xff]
                %209 = vst [vmem:[%s207] sm:$0xff] %v208
                %v210 = vld [vmem:[%s206 + $0x10] sm:$0xff]
                %211 = vst [vmem:[%s207 + $0x8] sm:$0xff] %v210
                %v212 = vld [vmem:[%s206 + $0x20] sm:$0xff]
                %213 = vst [vmem:[%s207 + $0x10] sm:$0xff] %v212
                %v214 = vld [vmem:[%s206 + $0x30] sm:$0xff]
                %215 = vst [vmem:[%s207 + $0x18] sm:$0xff] %v214
                %v216 = vld [vmem:[%s206 + $0x40] sm:$0xff]
                %217 = vst [vmem:[%s207 + $0x20] sm:$0xff] %v216
                %v218 = vld [vmem:[%s206 + $0x50] sm:$0xff]
                %219 = vst [vmem:[%s207 + $0x28] sm:$0xff] %v218
                %v220 = vld [vmem:[%s206 + $0x60] sm:$0xff]
                %221 = vst [vmem:[%s207 + $0x30] sm:$0xff] %v220
                %v222 = vld [vmem:[%s206 + $0x70] sm:$0xff]
                %223 = vst [vmem:[%s207 + $0x38] sm:$0xff] %v222
                %v224 = vld [vmem:[%s206 + $0x80] sm:$0xff]
                %225 = vst [vmem:[%s207 + $0x40] sm:$0xff] %v224
              $region45: #{up_forward.7} parent=39 // loop_footer
                %s205 = sadd.s32 1, %s201
              $region46: #{up_forward.7} parent=39 // loop_footer_branch
                %200 = sbr.rel target = $region42
              $region47: #{up_forward.7} parent=39 // loop_exit
                _
            $region40: #{up_forward.7} parent=31 // pred_fallthru
              _
          $region32: #{up_forward.7} parent=27 // pred_fallthru
            _
          %256 = vnop
        $region28: #{up_forward.7} parent=23 // pred_fallthru
          _
      $region24: #{up_forward.7} parent=5 // pred_fallthru
        _
      %p257 = scmp.le.s32.totalorder 1, %s12
      %p258 = scmp.lt.s32.totalorder %s12, 3
      %p259 = pnand %p257, %p258
      %p260 = pneg %p259
      // Predicated region
      $region63: #{up_forward.7} parent=5 // pred_check
        _
      $region64: #{up_forward.7} parent=5 // pred_check_branch
        %262 = sbr.rel (%p259) target = $region66
      $region65: #{up_forward.7} parent=5 // pred_region
        %s263 = ssub.s32 %s12, 1
        %s264 = sand.u32 %s25, 1
        %s265 = sand.u32 %s25, 1
        %s266 = smul.addr %s265, 72
        %s267 = scalar_lea.vmem [#allocation2], %s266
        // Predicated region
        $region67: #{up_forward.7} parent=65 // pred_check
          %p268 = pneg %p38
        $region68: #{up_forward.7} parent=65 // pred_check_branch
          %270 = sbr.rel (%p268) target = $region70
        $region69: #{up_forward.7} parent=65 // pred_region
          _
        $region70: #{up_forward.7} parent=65 // pred_fallthru
          _
        %s271 = sand.u32 %s25, 1
        %s272 = sand.u32 %s25, 1
        %s273 = smul.addr %s272, 72
        %s274 = scalar_lea.vmem [#allocation2], %s273
        %p275 = pneg %p38
        %p276 = pneg %p35
        %p277 = pneg %p59
        %p278 = pneg %p56
        %p279 = pneg %p80
        %p280 = pneg %p77
        %p281 = pneg %p106
        %p282 = pneg %p103
        %s283 = smul.u32 2, %s17
        %p284 = scmp.lt.s32.totalorder %s283, 3
        %s285 = scalar_select %p284, %s283, 3
        %s286 = smul.addr %s285, 8
        %s287 = scalar_lea.vmem %s3, %s286
        %p288 = pneg %p132
        %p289 = pneg %p129
        %p290 = scmp.lt.s32.totalorder %s17, 1
        %s291 = scalar_select %p290, %s17, 1
        %s292 = smul.addr %s291, 8
        %s293 = scalar_lea.vmem %s4, %s292
        %p294 = pneg %p158
        %p295 = pneg %p155
        %p296 = scmp.lt.s32.totalorder %s17, 1
        %s297 = scalar_select %p296, %s17, 1
        %s298 = smul.addr %s297, 8
        %s299 = scalar_lea.vmem %s5, %s298
        %s300 = smul.u32 2, %s17
        %s301 = smul.u32 2, %s17
        %p302 = scmp.lt.s32.totalorder %s301, 3
        %s303 = scalar_select %p302, %s301, 3
        %s304 = smul.addr %s303, 8
        %s305 = scalar_lea.vmem %s3, %s304
        %s306 = smul.u32 2, %s17
        %p307 = scmp.lt.s32.totalorder %s17, 1
        %s308 = scalar_select %p307, %s17, 1
        %s309 = smul.addr %s308, 8
        %s310 = scalar_lea.vmem %s4, %s309
        %p311 = scmp.lt.s32.totalorder %s17, 1
        %s312 = scalar_select %p311, %s17, 1
        %s313 = smul.addr %s312, 8
        %s314 = scalar_lea.vmem %s5, %s313
        %v316 = vld [vmem:[%s1] sm:$0xf]
        %v317 = vld [vmem:[%s267] sm:$0xff]
        %v318 = vld [vmem:[%s267 + $0x8] sm:$0xff]
        %v319 = vld [vmem:[%s267 + $0x10] sm:$0xff]
        %v320 = vld [vmem:[%s267 + $0x18] sm:$0xff]
        %v321 = vld [vmem:[%s267 + $0x20] sm:$0xff]
        %v322 = vld [vmem:[%s267 + $0x28] sm:$0xff]
        %v323 = vld [vmem:[%s267 + $0x30] sm:$0xff]
        %v324 = vld [vmem:[%s267 + $0x38] sm:$0xff]
        %v325 = vld [vmem:[%s267 + $0x40] sm:$0xff]
        %v326 = vld [vmem:[%s2] sm:$0xff]
        %328 = vset.pattern.permute.xlu0 0
        %329 = vperm.xlu0 %328, %v326
        %v330 = vpop.permute.xlu0 %329
        %v341 = vunpack.c.l.b16 %v317
        %v342 = vunpack.c.h.b16 %v317
        %v343 = vunpack.c.l.b16 %v318
        %v344 = vunpack.c.h.b16 %v318
        %v345 = vunpack.c.l.b16 %v319
        %v346 = vunpack.c.h.b16 %v319
        %v347 = vunpack.c.l.b16 %v320
        %v348 = vunpack.c.h.b16 %v320
        %v349 = vunpack.c.l.b16 %v321
        %v350 = vunpack.c.h.b16 %v321
        %v351 = vunpack.c.l.b16 %v322
        %v352 = vunpack.c.h.b16 %v322
        %v353 = vunpack.c.l.b16 %v323
        %v354 = vunpack.c.h.b16 %v323
        %v355 = vunpack.c.l.b16 %v324
        %v356 = vunpack.c.h.b16 %v324
        %v357 = vunpack.c.l.b16 %v325
        %v358 = vunpack.c.h.b16 %v325
        %v359 = vpack.c.b16 %v343, %v341
        %v360 = vpack.c.b16 %v344, %v342
        %v361 = vpack.c.b16 %v347, %v345
        %v362 = vpack.c.b16 %v348, %v346
        %v363 = vpack.c.b16 %v351, %v349
        %v364 = vpack.c.b16 %v352, %v350
        %v365 = vpack.c.b16 %v355, %v353
        %v366 = vpack.c.b16 %v356, %v354
        %v367 = vpack.c.b16 %v357, %v357
        %v368 = vpack.c.b16 %v358, %v358
        %vm377 = vcmask 588800
        %v379 = vsel %vm377, %v316, 0
        %vm381 = vcmask 1043456
        %v383 = vsel %vm381, %v367, 0
        %v386 = vsel %vm381, %v368, 0
        %388 = vmatprep.subr.bf16.mxu0 %v360
        %389 = vmatpush1.bf16.msra.mxu0 %v359
        %390 = vmatprep.subr.bf16.mxu0 %v362
        %391 = vmatpush1.bf16.msra.mxu0 %v361
        %392 = vmatprep.subr.bf16.mxu0 %v364
        %393 = vmatpush1.bf16.msra.mxu0 %v363
        %394 = vmatprep.subr.bf16.mxu0 %v366
        %395 = vmatpush1.bf16.msra.mxu0 %v365
        %396 = vmatprep.subr.bf16.mxu0 %v386
        %397 = vmatpush1.bf16.msra.mxu0 %v383
        %398 = vmatprep.subr.bf16.mxu0 0
        %399 = vmatpush1.bf16.msra.mxu0 0
        %400 = vmatprep.subr.bf16.mxu0 0
        %401 = vmatpush1.bf16.msra.mxu0 0
        %402 = vmatprep.subr.bf16.mxu0 0
        %403 = vmatpush1.bf16.msra.mxu0 0
        %404 = vmatprep.subr.bf16.mxu0 0
        %405 = vmatpush1.bf16.msra.mxu0 0
        %406 = vmatprep.subr.bf16.mxu0 0
        %407 = vmatpush1.bf16.msra.mxu0 0
        %408 = vmatprep.subr.bf16.mxu0 0
        %409 = vmatpush1.bf16.msra.mxu0 0
        %410 = vmatprep.subr.bf16.mxu0 0
        %411 = vmatpush1.bf16.msra.mxu0 0
        %412 = vmatprep.subr.bf16.mxu0 0
        %413 = vmatpush1.bf16.msra.mxu0 0
        %414 = vmatprep.subr.bf16.mxu0 0
        %415 = vmatpush1.bf16.msra.mxu0 0
        %416 = vmatprep.subr.bf16.mxu0 0
        %417 = vmatpush1.bf16.msra.mxu0 0
        %418 = vmatprep.subr.bf16.mxu0 0
        %419 = vmatpush1.bf16.msra.mxu0 0
        %420 = vmatprep.mubr.bf16.mxu0 0
        %421 = vmatmul.mubr.bf16.gmra.mrb[0].mxu0 %v379
        %v422 = vpop.f32.mrb[0].mxu0
        %v423 = vadd.f32 %v330, %v422
        %v424 = vpop.f32.mrb[0].mxu0
        %v425 = vadd.f32 %v330, %v424
        %v426 = vpop.f32.mrb[0].mxu0
        %v427 = vpop.f32.mrb[0].mxu0
        %428 = vdwg.mxu0
        %429 = vst [vmem:[%s305] sm:$0xff] %v423
        %430 = vst [vmem:[%s305 + $0x8] sm:$0xff] %v425
        %v431 = vadd.f32 %v423, %v425
        %432 = vadd.xlane.f32.xlu0 %v431
        %v433 = vpop.xlane.xlu0 %432
        %vm434 = vcmask 7168
        %435 = vst.msk [vmem:[%s310] sm:$0xff] %vm434, %v433
        %v436 = vmul.f32 %v423, %v423
        %v437 = vmul.f32 %v425, %v425
        %v438 = vadd.f32 %v436, %v437
        %439 = vadd.xlane.f32.xlu0 %v438
        %v440 = vpop.xlane.xlu0 %439
        %441 = vst.msk [vmem:[%s314] sm:$0xff] %vm434, %v440
        %s442 = smul.u32 2, %s17
        %p443 = scmp.lt.s32.totalorder %s442, 3
        %s444 = scalar_select %p443, %s442, 3
        %s445 = smul.addr %s444, 8
        %s446 = scalar_lea.vmem %s3, %s445
        %p447 = scmp.lt.s32.totalorder %s17, 1
        %s448 = scalar_select %p447, %s17, 1
        %s449 = smul.addr %s448, 8
        %s450 = scalar_lea.vmem %s4, %s449
        %p451 = scmp.lt.s32.totalorder %s17, 1
        %s452 = scalar_select %p451, %s17, 1
        %s453 = smul.addr %s452, 8
        %s454 = scalar_lea.vmem %s5, %s453
        // Predicated region
        $region71: #{up_forward.7} parent=65 // pred_check
          %p455 = pneg %p103
        $region72: #{up_forward.7} parent=65 // pred_check_branch
          %457 = sbr.rel (%p455) target = $region74
        $region73: #{up_forward.7} parent=65 // pred_region
          %s458 = smul.u32 2, %s17
        $region74: #{up_forward.7} parent=65 // pred_fallthru
          _
        // Predicated region
        $region75: #{up_forward.7} parent=65 // pred_check
          %p459 = pneg %p129
        $region76: #{up_forward.7} parent=65 // pred_check_branch
          %461 = sbr.rel (%p459) target = $region78
        $region77: #{up_forward.7} parent=65 // pred_region
          _
        $region78: #{up_forward.7} parent=65 // pred_fallthru
          _
        // Predicated region
        $region79: #{up_forward.7} parent=65 // pred_check
          %p462 = pneg %p155
        $region80: #{up_forward.7} parent=65 // pred_check_branch
          %464 = sbr.rel (%p462) target = $region82
        $region81: #{up_forward.7} parent=65 // pred_region
          _
        $region82: #{up_forward.7} parent=65 // pred_fallthru
          _
      $region66: #{up_forward.7} parent=5 // pred_fallthru
        _
      %p465 = scmp.le.s32.totalorder 2, %s12
      // Predicated region
      $region83: #{up_forward.7} parent=5 // pred_check
        %p466 = pneg %p465
      $region84: #{up_forward.7} parent=5 // pred_check_branch
        %468 = sbr.rel (%p466) target = $region86
      $region85: #{up_forward.7} parent=5 // pred_region
        %s469 = ssub.s32 %s12, 2
        // Predicated region
        $region87: #{up_forward.7} parent=85 // pred_check
          %p470 = pneg %p109
        $region88: #{up_forward.7} parent=85 // pred_check_branch
          %472 = sbr.rel (%p470) target = $region90
        $region89: #{up_forward.7} parent=85 // pred_region
          %s473 = smul.u32 2, %s18
          %p474 = scmp.lt.s32.totalorder %s473, 3
          %s475 = scalar_select %p474, %s473, 3
          %s476 = smul.addr %s475, 8
          %s477 = scalar_lea.vmem %s3, %s476
        $region90: #{up_forward.7} parent=85 // pred_fallthru
          _
        // Predicated region
        $region91: #{up_forward.7} parent=85 // pred_check
          %p478 = pneg %p135
        $region92: #{up_forward.7} parent=85 // pred_check_branch
          %480 = sbr.rel (%p478) target = $region94
        $region93: #{up_forward.7} parent=85 // pred_region
          %p481 = scmp.lt.s32.totalorder %s18, 1
          %s482 = scalar_select %p481, %s18, 1
          %s483 = smul.addr %s482, 8
          %s484 = scalar_lea.vmem %s4, %s483
        $region94: #{up_forward.7} parent=85 // pred_fallthru
          _
        // Predicated region
        $region95: #{up_forward.7} parent=85 // pred_check
          %p485 = pneg %p161
        $region96: #{up_forward.7} parent=85 // pred_check_branch
          %487 = sbr.rel (%p485) target = $region98
        $region97: #{up_forward.7} parent=85 // pred_region
          %p488 = scmp.lt.s32.totalorder %s18, 1
          %s489 = scalar_select %p488, %s18, 1
          %s490 = smul.addr %s489, 8
          %s491 = scalar_lea.vmem %s5, %s490
        $region98: #{up_forward.7} parent=85 // pred_fallthru
          _
      $region86: #{up_forward.7} parent=5 // pred_fallthru
        _
    $region6: #{up_forward.7} parent=1 // loop_footer
      %s16 = sadd.s32 1, %s12
    $region7: #{up_forward.7} parent=1 // loop_footer_branch
      %11 = sbr.rel target = $region3
    $region8: #{up_forward.7} parent=1 // loop_exit
      _

// kernel: up_forward.9
$region0: #{up_forward.9}
  #allocation0 [shape = 'u32[]', space=smem, size = 0x4, offset = 0x4, fixed_abs, tag = 'smem constant byte address 0x4 - core index']
  #allocation1 [shape = 'u32[144,128]{1,0:T(1,128)}', space=vmem, size = 0x12000, scoped, tag = 'internal scratch']
  %s0 = inlined_call_operand.vmem [shape: bf16[32,512], index: 0, kind: input, shape index: {}]
  %s1 = inlined_call_operand.vmem [shape: bf16[16,32], index: 1, kind: input, shape index: {}]
  %s2 = inlined_call_operand.vmem [shape: f32[16,1], index: 2, kind: input, shape index: {}]
  %s3 = inlined_call_operand.vmem [shape: f32[16,512], index: 3, kind: output, shape index: {}]
  %s4 = sld [smem:[#allocation0]]
  $region102: #{up_forward.9} parent=0
    _
  %s6 = ssub.s32 1, %s4
  %s7 = scalar_select 0, %s6, %s4
  $region1: #{up_forward.9} parent=0
    #allocation2 [shape = 'u8[32768]{0}', space=vmem, size = 0x8000, scoped, tag = 'input window, operand 0']
    #allocation3 [shape = 'u8[32768]{0}', space=vmem, size = 0x8000, scoped, tag = 'output window, operand 0']
    loop: start=0, step=1, limit=4
    $region2: #{up_forward.9} parent=1 // loop_pre_header
      _
    $region3: #{up_forward.9} parent=1 // loop_header
      %s9 = sphi 0, %s13
      %p10 = scmp.ge.s32.totalorder %s9, 4
      %s19 = sphi 0, %s21
      %s22 = sphi 0, %s19
      %s23 = sphi 0, %s22
      %s39 = sphi 0, %s23
      %s43 = sphi 0, %s43
      %s45 = sphi 0, %s43
      %s46 = sphi 0, %s45
      %s60 = sphi 0, %s46
      %s64 = sphi 0, %s64
      %s66 = sphi 0, %s64
      %s67 = sphi 0, %s66
      %s81 = sphi 0, %s67
      %s87 = sphi 0, %s89
      %s90 = sphi 0, %s87
      %s91 = sphi 0, %s90
      %s107 = sphi 0, %s91
    $region4: #{up_forward.9} parent=1 // loop_header_branch
      %12 = sbr.rel (%p10) target = $region8
    $region5: #{up_forward.9} parent=1 // loop_body
      %s14 = ssub.s32 %s9, 1
      %s15 = ssub.s32 %s9, 2
      %s16 = sadd.s32 %s9, 1
      %s17 = ssub.s32 %s9, %s16
      %p18 = scmp.eq.s32.totalorder %s17, 0
      %s20 = sadd.s32 %s19, 1
      %s21 = scalar_select %p18, %s19, %s20
      %p24 = pneg %p18
      %p25 = scmp.eq.s32.totalorder %s9, 1
      %p26 = por %p24, %p25
      %p27 = scmp.ne.s32.totalorder %s19, %s22
      %p28 = scmp.eq.s32.totalorder %s9, 0
      %p29 = por %p27, %p28
      %p30 = scmp.ne.s32.totalorder %s19, %s22
      %p31 = scmp.eq.s32.totalorder %s14, 1
      %p32 = por %p30, %p31
      %p33 = scmp.ne.s32.totalorder %s22, %s23
      %p34 = scmp.eq.s32.totalorder %s14, 0
      %p35 = por %p33, %p34
      %p36 = scmp.ne.s32.totalorder %s22, %s23
      %p37 = scmp.eq.s32.totalorder %s15, 1
      %p38 = por %p36, %p37
      %p40 = scmp.ne.s32.totalorder %s23, %s39
      %p41 = scmp.eq.s32.totalorder %s15, 0
      %p42 = por %p40, %p41
      %s44 = sadd.s32 %s43, 1
      %p47 = scmp.eq.s32.totalorder %s9, 1
      %p48 = scmp.ne.s32.totalorder %s43, %s45
      %p49 = scmp.eq.s32.totalorder %s9, 0
      %p50 = por %p48, %p49
      %p51 = scmp.ne.s32.totalorder %s43, %s45
      %p52 = scmp.eq.s32.totalorder %s14, 1
      %p53 = por %p51, %p52
      %p54 = scmp.ne.s32.totalorder %s45, %s46
      %p55 = scmp.eq.s32.totalorder %s14, 0
      %p56 = por %p54, %p55
      %p57 = scmp.ne.s32.totalorder %s45, %s46
      %p58 = scmp.eq.s32.totalorder %s15, 1
      %p59 = por %p57, %p58
      %p61 = scmp.ne.s32.totalorder %s46, %s60
      %p62 = scmp.eq.s32.totalorder %s15, 0
      %p63 = por %p61, %p62
      %s65 = sadd.s32 %s64, 1
      %p68 = scmp.eq.s32.totalorder %s9, 1
      %p69 = scmp.ne.s32.totalorder %s64, %s66
      %p70 = scmp.eq.s32.totalorder %s9, 0
      %p71 = por %p69, %p70
      %p72 = scmp.ne.s32.totalorder %s64, %s66
      %p73 = scmp.eq.s32.totalorder %s14, 1
      %p74 = por %p72, %p73
      %p75 = scmp.ne.s32.totalorder %s66, %s67
      %p76 = scmp.eq.s32.totalorder %s14, 0
      %p77 = por %p75, %p76
      %p78 = scmp.ne.s32.totalorder %s66, %s67
      %p79 = scmp.eq.s32.totalorder %s15, 1
      %p80 = por %p78, %p79
      %p82 = scmp.ne.s32.totalorder %s67, %s81
      %p83 = scmp.eq.s32.totalorder %s15, 0
      %p84 = por %p82, %p83
      %s85 = ssub.s32 %s9, %s16
      %p86 = scmp.eq.s32.totalorder %s85, 0
      %s88 = sadd.s32 %s87, 1
      %s89 = scalar_select %p86, %s87, %s88
      %p92 = pneg %p86
      %p93 = scmp.eq.s32.totalorder %s9, 1
      %p94 = por %p92, %p93
      %p95 = scmp.ne.s32.totalorder %s87, %s90
      %p96 = scmp.eq.s32.totalorder %s9, 0
      %p97 = por %p95, %p96
      %p98 = scmp.ne.s32.totalorder %s87, %s90
      %p99 = scmp.eq.s32.totalorder %s14, 1
      %p100 = por %p98, %p99
      %p101 = scmp.ne.s32.totalorder %s90, %s91
      %p102 = scmp.eq.s32.totalorder %s14, 0
      %p103 = por %p101, %p102
      %p104 = scmp.ne.s32.totalorder %s90, %s91
      %p105 = scmp.eq.s32.totalorder %s15, 1
      %p106 = por %p104, %p105
      %p108 = scmp.ne.s32.totalorder %s91, %s107
      %p109 = scmp.eq.s32.totalorder %s15, 0
      %p110 = por %p108, %p109
      %p111 = scmp.le.s32.totalorder 1, %s9
      %p112 = scmp.lt.s32.totalorder %s9, 3
      %p113 = pnand %p111, %p112
      %p114 = pneg %p113
      // Predicated region
      $region9: #{up_forward.9} parent=5 // pred_check
        _
      $region10: #{up_forward.9} parent=5 // pred_check_branch
        %116 = sbr.rel (%p113) target = $region12
      $region11: #{up_forward.9} parent=5 // pred_region
        %s117 = ssub.s32 %s9, 1
        // Predicated region
        $region13: #{up_forward.9} parent=11 // pred_check
          %p118 = pneg %p56
        $region14: #{up_forward.9} parent=11 // pred_check_branch
          %120 = sbr.rel (%p118) target = $region16
        $region15: #{up_forward.9} parent=11 // pred_region
          _
        $region16: #{up_forward.9} parent=11 // pred_fallthru
          _
        // Predicated region
        $region17: #{up_forward.9} parent=11 // pred_check
          %p121 = pneg %p77
        $region18: #{up_forward.9} parent=11 // pred_check_branch
          %123 = sbr.rel (%p121) target = $region20
        $region19: #{up_forward.9} parent=11 // pred_region
          _
        $region20: #{up_forward.9} parent=11 // pred_fallthru
          _
      $region12: #{up_forward.9} parent=5 // pred_fallthru
        _
      %p124 = scmp.lt.s32.totalorder %s9, 2
      // Predicated region
      $region21: #{up_forward.9} parent=5 // pred_check
        %p125 = pneg %p124
      $region22: #{up_forward.9} parent=5 // pred_check_branch
        %127 = sbr.rel (%p125) target = $region24
      $region23: #{up_forward.9} parent=5 // pred_region
        // Predicated region
        $region25: #{up_forward.9} parent=23 // pred_check
          %p128 = pneg %p29
        $region26: #{up_forward.9} parent=23 // pred_check_branch
          %130 = sbr.rel (%p128) target = $region28
        $region27: #{up_forward.9} parent=23 // pred_region
          %s131 = sand.u32 %s19, 1
          %s132 = sand.u32 %s19, 1
          %s133 = smul.addr %s132, 32
          %s134 = scalar_lea.vmem [#allocation2], %s133
          %s135 = smul.u32 2, %s9
          %s136 = smul.addr %s135, 4
          %s137 = scalar_lea.vmem %s0, %s136
          // Predicated region
          $region29: #{up_forward.9} parent=27 // pred_check
            _
          $region30: #{up_forward.9} parent=27 // pred_check_branch
            %139 = sbr.rel (0) target = $region32
          $region31: #{up_forward.9} parent=27 // pred_region
            // Predicated region
            $region33: #{up_forward.9} parent=31 // pred_check
              _
            $region34: #{up_forward.9} parent=31 // pred_check_branch
              %141 = sbr.rel (0) target = $region36
            $region35: #{up_forward.9} parent=31 // pred_region
              // Predicated region
              $region48: #{up_forward.9} parent=35 // pred_check
                _
              $region49: #{up_forward.9} parent=35 // pred_check_branch
                %162 = sbr.rel (0) target = $region51
              $region50: #{up_forward.9} parent=35 // pred_region
                loop: start=0, step=1, limit=1
                $region52: #{up_forward.9} parent=50 // loop_pre_header
                  _
                $region53: #{up_forward.9} parent=50 // loop_header
                  %s164 = sphi 0, %s168
                  %p165 = scmp.ge.s32.totalorder %s164, 1
                  %s169 = sphi %s137, %s137
                  %s170 = sphi %s134, %s134
                $region54: #{up_forward.9} parent=50 // loop_header_branch
                  %167 = sbr.rel (%p165) target = $region58
                $region55: #{up_forward.9} parent=50 // loop_body
                  %v171 = vld [vmem:[%s169] sm:$0xff]
                  %172 = vst [vmem:[%s170] sm:$0xff] %v171
                  %v173 = vld [vmem:[%s169 + $0x10] sm:$0xff]
                  %174 = vst [vmem:[%s170 + $0x8] sm:$0xff] %v173
                  %v175 = vld [vmem:[%s169 + $0x20] sm:$0xff]
                  %176 = vst [vmem:[%s170 + $0x10] sm:$0xff] %v175
                  %v177 = vld [vmem:[%s169 + $0x30] sm:$0xff]
                  %178 = vst [vmem:[%s170 + $0x18] sm:$0xff] %v177
                $region56: #{up_forward.9} parent=50 // loop_footer
                  %s168 = sadd.s32 1, %s164
                $region57: #{up_forward.9} parent=50 // loop_footer_branch
                  %163 = sbr.rel target = $region53
                $region58: #{up_forward.9} parent=50 // loop_exit
                  _
              $region51: #{up_forward.9} parent=35 // pred_fallthru
                _
              // Predicated region
              $region59: #{up_forward.9} parent=35 // pred_check
                _
              $region60: #{up_forward.9} parent=35 // pred_check_branch
                %180 = sbr.rel target = $region62
              $region61: #{up_forward.9} parent=35 // pred_region
                _
              $region62: #{up_forward.9} parent=35 // pred_fallthru
                _
            $region36: #{up_forward.9} parent=31 // pred_fallthru
              _
            // Predicated region
            $region37: #{up_forward.9} parent=31 // pred_check
              _
            $region38: #{up_forward.9} parent=31 // pred_check_branch
              %143 = sbr.rel target = $region40
            $region39: #{up_forward.9} parent=31 // pred_region
              loop: start=0, step=1, limit=1
              $region41: #{up_forward.9} parent=39 // loop_pre_header
                _
              $region42: #{up_forward.9} parent=39 // loop_header
                %s146 = sphi 0, %s150
                %p147 = scmp.ge.s32.totalorder %s146, 1
                %s151 = sphi %s137, %s137
                %s152 = sphi %s134, %s134
              $region43: #{up_forward.9} parent=39 // loop_header_branch
                %149 = sbr.rel (%p147) target = $region47
              $region44: #{up_forward.9} parent=39 // loop_body
                %v153 = vld [vmem:[%s151] sm:$0xff]
                %154 = vst [vmem:[%s152] sm:$0xff] %v153
                %v155 = vld [vmem:[%s151 + $0x10] sm:$0xff]
                %156 = vst [vmem:[%s152 + $0x8] sm:$0xff] %v155
                %v157 = vld [vmem:[%s151 + $0x20] sm:$0xff]
                %158 = vst [vmem:[%s152 + $0x10] sm:$0xff] %v157
                %v159 = vld [vmem:[%s151 + $0x30] sm:$0xff]
                %160 = vst [vmem:[%s152 + $0x18] sm:$0xff] %v159
              $region45: #{up_forward.9} parent=39 // loop_footer
                %s150 = sadd.s32 1, %s146
              $region46: #{up_forward.9} parent=39 // loop_footer_branch
                %145 = sbr.rel target = $region42
              $region47: #{up_forward.9} parent=39 // loop_exit
                _
            $region40: #{up_forward.9} parent=31 // pred_fallthru
              _
          $region32: #{up_forward.9} parent=27 // pred_fallthru
            _
          %181 = vnop
        $region28: #{up_forward.9} parent=23 // pred_fallthru
          _
      $region24: #{up_forward.9} parent=5 // pred_fallthru
        _
      %p182 = scmp.le.s32.totalorder 1, %s9
      %p183 = scmp.lt.s32.totalorder %s9, 3
      %p184 = pnand %p182, %p183
      %p185 = pneg %p184
      // Predicated region
      $region63: #{up_forward.9} parent=5 // pred_check
        _
      $region64: #{up_forward.9} parent=5 // pred_check_branch
        %187 = sbr.rel (%p184) target = $region66
      $region65: #{up_forward.9} parent=5 // pred_region
        %s188 = ssub.s32 %s9, 1
        %s189 = sand.u32 %s22, 1
        %s190 = sand.u32 %s22, 1
        %s191 = smul.addr %s190, 32
        %s192 = scalar_lea.vmem [#allocation2], %s191
        // Predicated region
        $region67: #{up_forward.9} parent=65 // pred_check
          %p193 = pneg %p35
        $region68: #{up_forward.9} parent=65 // pred_check_branch
          %195 = sbr.rel (%p193) target = $region70
        $region69: #{up_forward.9} parent=65 // pred_region
          _
        $region70: #{up_forward.9} parent=65 // pred_fallthru
          _
        %s196 = sand.u32 %s22, 1
        %s197 = sand.u32 %s22, 1
        %s198 = smul.addr %s197, 32
        %s199 = scalar_lea.vmem [#allocation2], %s198
        %p200 = pneg %p35
        %p201 = pneg %p32
        %p202 = pneg %p56
        %p203 = pneg %p53
        %p204 = pneg %p77
        %p205 = pneg %p74
        %p206 = pneg %p103
        %p207 = pneg %p100
        %s208 = sand.u32 %s90, 1
        %s209 = sand.u32 %s90, 1
        %s210 = smul.addr %s209, 32
        %s211 = scalar_lea.vmem [#allocation3], %s210
        %s212 = smul.u32 2, %s14
        %s213 = smul.u32 2, %s14
        %v215 = vld [vmem:[%s1] sm:$0xf]
        %v216 = vld [vmem:[%s1 + $0x4] sm:$0xf]
        %v217 = vld [vmem:[%s192] sm:$0xff]
        %v218 = vld [vmem:[%s192 + $0x8] sm:$0xff]
        %v219 = vld [vmem:[%s192 + $0x10] sm:$0xff]
        %v220 = vld [vmem:[%s192 + $0x18] sm:$0xff]
        %v221 = vld [vmem:[%s2] sm:$0xff]
        %v222 = vld [vmem:[%s2 + $0x8] sm:$0xff]
        %224 = vset.pattern.permute.xlu0 0
        %225 = vperm.xlu0 %224, %v221
        %v226 = vpop.permute.xlu0 %225
        %229 = vset.pattern.permute.xlu0 0
        %230 = vperm.xlu0 %229, %v222
        %v231 = vpop.permute.xlu0 %230
        %v235 = vunpack.c.l.b16 %v215
        %v236 = vunpack.c.l.b16 %v216
        %v237 = vpack.c.b16 %v236, %v235
        %v242 = vunpack.c.l.b16 %v217
        %v243 = vunpack.c.h.b16 %v217
        %v244 = vunpack.c.l.b16 %v218
        %v245 = vunpack.c.h.b16 %v218
        %v246 = vunpack.c.l.b16 %v219
        %v247 = vunpack.c.h.b16 %v219
        %v248 = vunpack.c.l.b16 %v220
        %v249 = vunpack.c.h.b16 %v220
        %v250 = vpack.c.b16 %v244, %v242
        %v251 = vpack.c.b16 %v245, %v243
        %v252 = vpack.c.b16 %v248, %v246
        %v253 = vpack.c.b16 %v249, %v247
        %vm258 = vcmask 261120
        %v260 = vsel %vm258, %v237, 0
        %262 = vmatprep.subr.bf16.mxu0 %v251
        %263 = vmatpush1.bf16.msra.mxu0 %v250
        %264 = vmatprep.subr.bf16.mxu0 %v253
        %265 = vmatpush1.bf16.msra.mxu0 %v252
        %266 = vmatprep.subr.bf16.mxu0 0
        %267 = vmatpush1.bf16.msra.mxu0 0
        %268 = vmatprep.subr.bf16.mxu0 0
        %269 = vmatpush1.bf16.msra.mxu0 0
        %270 = vmatprep.subr.bf16.mxu0 0
        %271 = vmatpush1.bf16.msra.mxu0 0
        %272 = vmatprep.subr.bf16.mxu0 0
        %273 = vmatpush1.bf16.msra.mxu0 0
        %274 = vmatprep.subr.bf16.mxu0 0
        %275 = vmatpush1.bf16.msra.mxu0 0
        %276 = vmatprep.subr.bf16.mxu0 0
        %277 = vmatpush1.bf16.msra.mxu0 0
        %278 = vmatprep.subr.bf16.mxu0 0
        %279 = vmatpush1.bf16.msra.mxu0 0
        %280 = vmatprep.subr.bf16.mxu0 0
        %281 = vmatpush1.bf16.msra.mxu0 0
        %282 = vmatprep.subr.bf16.mxu0 0
        %283 = vmatpush1.bf16.msra.mxu0 0
        %284 = vmatprep.subr.bf16.mxu0 0
        %285 = vmatpush1.bf16.msra.mxu0 0
        %286 = vmatprep.subr.bf16.mxu0 0
        %287 = vmatpush1.bf16.msra.mxu0 0
        %288 = vmatprep.subr.bf16.mxu0 0
        %289 = vmatpush1.bf16.msra.mxu0 0
        %290 = vmatprep.subr.bf16.mxu0 0
        %291 = vmatpush1.bf16.msra.mxu0 0
        %292 = vmatprep.subr.bf16.mxu0 0
        %293 = vmatpush1.bf16.msra.mxu0 0
        %294 = vmatprep.mubr.bf16.mxu0 0
        %295 = vmatmul.mubr.bf16.gmra.mrb[0].mxu0 %v260
        %v296 = vpop.f32.mrb[0].mxu0
        %v297 = vadd.f32 %v226, %v296
        %v298 = vpop.f32.mrb[0].mxu0
        %v299 = vadd.f32 %v226, %v298
        %v300 = vpop.f32.mrb[0].mxu0
        %v301 = vadd.f32 %v231, %v300
        %v302 = vpop.f32.mrb[0].mxu0
        %v303 = vadd.f32 %v231, %v302
        %304 = vdwg.mxu0
        %305 = vst [vmem:[%s211] sm:$0xff] %v297
        %306 = vst [vmem:[%s211 + $0x8] sm:$0xff] %v299
        %307 = vst [vmem:[%s211 + $0x10] sm:$0xff] %v301
        %308 = vst [vmem:[%s211 + $0x18] sm:$0xff] %v303
        %s309 = sand.u32 %s90, 1
        %s310 = sand.u32 %s90, 1
        %s311 = smul.addr %s310, 32
        %s312 = scalar_lea.vmem [#allocation3], %s311
        // Predicated region
        $region71: #{up_forward.9} parent=65 // pred_check
          %p313 = pneg %p100
        $region72: #{up_forward.9} parent=65 // pred_check_branch
          %315 = sbr.rel (%p313) target = $region74
        $region73: #{up_forward.9} parent=65 // pred_region
          %s316 = smul.u32 2, %s14
          %s317 = smul.addr %s316, 8
          %s318 = scalar_lea.vmem %s3, %s317
          // Predicated region
          $region75: #{up_forward.9} parent=73 // pred_check
            _
          $region76: #{up_forward.9} parent=73 // pred_check_branch
            %320 = sbr.rel (0) target = $region78
          $region77: #{up_forward.9} parent=73 // pred_region
            // Predicated region
            $region79: #{up_forward.9} parent=77 // pred_check
              _
            $region80: #{up_forward.9} parent=77 // pred_check_branch
              %322 = sbr.rel (0) target = $region82
            $region81: #{up_forward.9} parent=77 // pred_region
              loop: start=0, step=1, limit=1
              $region83: #{up_forward.9} parent=81 // loop_pre_header
                _
              $region84: #{up_forward.9} parent=81 // loop_header
                %s324 = sphi 0, %s328
                %p325 = scmp.ge.s32.totalorder %s324, 1
                %s329 = sphi %s312, %s312
                %s330 = sphi %s318, %s318
              $region85: #{up_forward.9} parent=81 // loop_header_branch
                %327 = sbr.rel (%p325) target = $region89
              $region86: #{up_forward.9} parent=81 // loop_body
                %v331 = vld [vmem:[%s329] sm:$0xff]
                %332 = vst [vmem:[%s330] sm:$0xff] %v331
                %v333 = vld [vmem:[%s329 + $0x8] sm:$0xff]
                %334 = vst [vmem:[%s330 + $0x8] sm:$0xff] %v333
                %v335 = vld [vmem:[%s329 + $0x10] sm:$0xff]
                %336 = vst [vmem:[%s330 + $0x20] sm:$0xff] %v335
                %v337 = vld [vmem:[%s329 + $0x18] sm:$0xff]
                %338 = vst [vmem:[%s330 + $0x28] sm:$0xff] %v337
              $region87: #{up_forward.9} parent=81 // loop_footer
                %s328 = sadd.s32 1, %s324
              $region88: #{up_forward.9} parent=81 // loop_footer_branch
                %323 = sbr.rel target = $region84
              $region89: #{up_forward.9} parent=81 // loop_exit
                _
            $region82: #{up_forward.9} parent=77 // pred_fallthru
              _
            // Predicated region
            $region90: #{up_forward.9} parent=77 // pred_check
              _
            $region91: #{up_forward.9} parent=77 // pred_check_branch
              %340 = sbr.rel target = $region93
            $region92: #{up_forward.9} parent=77 // pred_region
              _
            $region93: #{up_forward.9} parent=77 // pred_fallthru
              _
          $region78: #{up_forward.9} parent=73 // pred_fallthru
            _
          %341 = vnop
        $region74: #{up_forward.9} parent=65 // pred_fallthru
          _
      $region66: #{up_forward.9} parent=5 // pred_fallthru
        _
      %p342 = scmp.le.s32.totalorder 2, %s9
      // Predicated region
      $region94: #{up_forward.9} parent=5 // pred_check
        %p343 = pneg %p342
      $region95: #{up_forward.9} parent=5 // pred_check_branch
        %345 = sbr.rel (%p343) target = $region97
      $region96: #{up_forward.9} parent=5 // pred_region
        %s346 = ssub.s32 %s9, 2
        // Predicated region
        $region98: #{up_forward.9} parent=96 // pred_check
          %p347 = pneg %p106
        $region99: #{up_forward.9} parent=96 // pred_check_branch
          %349 = sbr.rel (%p347) target = $region101
        $region100: #{up_forward.9} parent=96 // pred_region
          %s350 = sand.u32 %s91, 1
          %s351 = sand.u32 %s91, 1
          %s352 = smul.addr %s351, 32
          %s353 = scalar_lea.vmem [#allocation3], %s352
        $region101: #{up_forward.9} parent=96 // pred_fallthru
          _
      $region97: #{up_forward.9} parent=5 // pred_fallthru
        _
    $region6: #{up_forward.9} parent=1 // loop_footer
      %s13 = sadd.s32 1, %s9
    $region7: #{up_forward.9} parent=1 // loop_footer_branch
      %8 = sbr.rel target = $region3
    $region8: #{up_forward.9} parent=1 // loop_exit
      _

</llo_original>
